<compile_context>
chip_gen: v5e
topology: v5e:2x2
jax: 0.10.0
libtpu: 0.0.40
codegen_flags: <defaults>
</compile_context>

<pallas_src>
import functools

import numpy as np
import jax
import jax.numpy as jnp
from jax import lax
from jax.experimental import pallas as pl
from jax.experimental.pallas import tpu as pltpu

LRELU_SLOPE = 0.2
BN_EPS = 1e-5


def _round_up(x, m):
    return ((x + m - 1) // m) * m


def _cdiv(a, b):
    return -(-a // b)


def _vmem_budgets():
    """Derive scoped VMEM limit + live-tile budget from the device (v5e/v6e 128 MiB phys,
    v7x 64 MiB). Falls back to the v7x-safe values if the query is unavailable."""
    phys = 64 * 1024 * 1024
    try:
        info = pltpu.get_tpu_info()
        cap = getattr(info, "vmem_capacity_bytes", None)
        if cap:
            phys = int(cap)
    except Exception:
        pass
    limit = min((phys * 3) // 4, 100 * 1024 * 1024)   # v5e/v6e ~96 MiB, v7x ~48 MiB
    budget = (limit * 7) // 10
    return int(limit), int(budget)


_VMEM_LIMIT, _TILE_BUDGET = _vmem_budgets()


# ----------------------------------------------------------------------------
# Tile selection
# ----------------------------------------------------------------------------
def _pick_tiles(M, Kp, Cp):
    """Choose (tile_m, tile_k, Kp') so that double-buffered bf16 LHS / weight blocks,
    double-buffered f32 output blocks and the f32 accumulator fit the VMEM budget."""
    max_tk = 1024
    if Kp <= max_tk:
        tile_k, Kp2 = Kp, Kp
    else:
        nk = _cdiv(Kp, max_tk)
        tile_k = _round_up(_cdiv(Kp, nk), 128)
        Kp2 = _round_up(Kp, tile_k)

    def fits(tm):
        b = (2 * tm * tile_k * 2        # LHS bf16, double buffered
             + 2 * tile_k * Cp * 2      # weight bf16, double buffered
             + 2 * tm * Cp * 4          # f32 output, double buffered
             + tm * Cp * 4)             # f32 accumulator scratch
        return b <= _TILE_BUDGET

    tile_m = min(512, _round_up(M, 8))
    while tile_m > 8 and not fits(tile_m):
        tile_m = max(8, _round_up(tile_m // 2, 8))
    return tile_m, tile_k, Kp2


def _pick_bn_row_tile(M, tile_m, Cp):
    """Pass 2 is pure HBM streaming: use a much larger row tile (multiple of tile_m)."""
    max_rows = max(tile_m, _TILE_BUDGET // (16 * Cp))
    r = max(1, min(2048 // tile_m, max_rows // tile_m, _cdiv(M, tile_m)))
    return tile_m * r


# ----------------------------------------------------------------------------
# Pallas kernels
# ----------------------------------------------------------------------------
def matmul_act_kernel(x_ref, w_ref, o_ref, acc_ref, *, slope):
    """K-tiled y = x @ w with f32 accumulator; optional fused LeakyReLU at finalize."""
    k = pl.program_id(1)

    @pl.when(k == 0)
    def _init():
        acc_ref[...] = jnp.zeros_like(acc_ref)

    acc_ref[...] += jnp.dot(x_ref[...], w_ref[...],
                            preferred_element_type=jnp.float32)

    @pl.when(k == pl.num_programs(1) - 1)
    def _finalize():
        y = acc_ref[...]
        if slope is not None:
            y = jnp.where(y >= 0.0, y, slope * y)
        o_ref[...] = y


def matmul_stats_kernel(x_ref, w_ref, y_ref, stats_ref, acc_ref):
    """K-tiled y = x @ w; at the last K step also writes this M-tile's per-channel
    [sum; sum_sq] partial stats (no cross-tile reduction -> M axis stays parallel)."""
    k = pl.program_id(1)

    @pl.when(k == 0)
    def _init():
        acc_ref[...] = jnp.zeros_like(acc_ref)

    acc_ref[...] += jnp.dot(x_ref[...], w_ref[...],
                            preferred_element_type=jnp.float32)

    @pl.when(k == pl.num_programs(1) - 1)
    def _finalize():
        y = acc_ref[...]
        y_ref[...] = y
        stats_ref[0] = jnp.concatenate(
            [jnp.sum(y, axis=0, keepdims=True),
             jnp.sum(y * y, axis=0, keepdims=True)], axis=0)


def bn_act_kernel(y_ref, scale_ref, shift_ref, o_ref, *, slope):
    """Pass 2 of training-mode BN: y*scale + shift, then LeakyReLU (pure streaming)."""
    y = y_ref[...] * scale_ref[...] + shift_ref[...]
    o_ref[...] = jnp.where(y >= 0.0, y, slope * y)


# ----------------------------------------------------------------------------
# Tiled layer driver: matmul (+ fused act) or matmul + two-pass BN + act
# ----------------------------------------------------------------------------
def _matmul_layer(x_col, w_mat, *, bn, slope):
    M, K = x_col.shape
    Cout = w_mat.shape[1]
    Kp = _round_up(K, 128)                      # aligned LHS loads
    Cp = _round_up(Cout, 128)                   # lane-dense (unmasked) stores
    tile_m, tile_k, Kp = _pick_tiles(M, Kp, Cp)
    row_mult = _pick_bn_row_tile(M, tile_m, Cp) if bn else tile_m
    Mp = _round_up(M, row_mult)

    # Pad (zero rows/cols contribute nothing, sliced off at the end) and cast the MXU
    # operands to bf16; accumulation is f32 inside the kernels.
    x_col = jnp.pad(x_col, ((0, Mp - M), (0, Kp - K))).astype(jnp.bfloat16)
    w_mat = jnp.pad(w_mat, ((0, Kp - K), (0, Cp - Cout))).astype(jnp.bfloat16)

    n_m, n_k = Mp // tile_m, Kp // tile_k
    grid = (n_m, n_k)
    x_spec = pl.BlockSpec((tile_m, tile_k), lambda m, k: (m, k))
    w_spec = pl.BlockSpec((tile_k, Cp), lambda m, k: (k, 0))
    y_spec = pl.BlockSpec((tile_m, Cp), lambda m, k: (m, 0))
    acc = pltpu.VMEM((tile_m, Cp), jnp.float32)
    cparams = pltpu.CompilerParams(
        dimension_semantics=("parallel", "arbitrary"),
        vmem_limit_bytes=_VMEM_LIMIT)

    if not bn:
        y = pl.pallas_call(
            functools.partial(matmul_act_kernel, slope=slope),
            out_shape=jax.ShapeDtypeStruct((Mp, Cp), jnp.float32),
            grid=grid, in_specs=[x_spec, w_spec], out_specs=y_spec,
            scratch_shapes=[acc], compiler_params=cparams,
        )(x_col, w_mat)
        return y[:M, :Cout]

    # Pass 1: matmul + per-M-tile partial stats (M axis parallel / megacore-friendly).
    y, stats = pl.pallas_call(
        matmul_stats_kernel,
        out_shape=(jax.ShapeDtypeStruct((Mp, Cp), jnp.float32),
                   jax.ShapeDtypeStruct((n_m, 2, Cp), jnp.float32)),
        grid=grid,
        in_specs=[x_spec, w_spec],
        out_specs=(y_spec, pl.BlockSpec((1, 2, Cp), lambda m, k: (m, 0, 0))),
        scratch_shapes=[acc], compiler_params=cparams,
    )(x_col, w_mat)

    # Tiny JAX epilogue: reduce per-tile stats, fold BN into one scale/shift.
    total = jnp.sum(stats, axis=0)                       # (2, Cp)
    mean = total[0] / M                                  # padded rows contribute 0
    var = jnp.maximum(total[1] / M - mean * mean, 0.0)   # biased var, cancellation guard
    inv = lax.rsqrt(var + BN_EPS)
    scale = inv.reshape(1, Cp)
    shift = (-mean * inv).reshape(1, Cp)

    # Pass 2: streaming normalize + LeakyReLU with a large row tile.
    tm2 = row_mult
    y = pl.pallas_call(
        functools.partial(bn_act_kernel, slope=slope),
        out_shape=jax.ShapeDtypeStruct((Mp, Cp), jnp.float32),
        grid=(Mp // tm2,),
        in_specs=[pl.BlockSpec((tm2, Cp), lambda m: (m, 0)),
                  pl.BlockSpec((1, Cp), lambda m: (0, 0)),
                  pl.BlockSpec((1, Cp), lambda m: (0, 0))],
        out_specs=pl.BlockSpec((tm2, Cp), lambda m: (m, 0)),
        compiler_params=pltpu.CompilerParams(
            dimension_semantics=("parallel",),
            vmem_limit_bytes=_VMEM_LIMIT),
    )(y, scale, shift)
    return y[:M, :Cout]


# ----------------------------------------------------------------------------
# Conv layer wrapper (im2col glue is JAX; hot path is the Pallas matmul kernel)
# ----------------------------------------------------------------------------
def conv_layer(x_nhwc, w, *, stride, pad, bn, slope):
    """Conv2d(Cin->Cout, k, stride, pad, bias=False) [+ train-mode BN] [+ LeakyReLU].
       x_nhwc: (N, H, W, Cin); w: PyTorch layout (Cout, Cin, k, k)."""
    N, H, W, Cin = x_nhwc.shape
    Cout, _, k, _ = w.shape
    Ho = (H + 2 * pad - k) // stride + 1
    Wo = (W + 2 * pad - k) // stride + 1
    x_pad = jnp.pad(x_nhwc, ((0, 0), (pad, pad), (pad, pad), (0, 0)))
    # TODO(synk): im2col is still materialized in HBM by XLA (k^2/stride^2 activation-read
    # blow-up); moving the tap decomposition in-kernel (halo DMA + per-tap accumulation into
    # the existing K-axis accumulator) would cut that traffic further.
    taps = [x_pad[:, kh:kh + stride * Ho:stride, kw:kw + stride * Wo:stride, :]
            for kh in range(k) for kw in range(k)]
    x_col = jnp.concatenate(taps, axis=-1).reshape(N * Ho * Wo, k * k * Cin)
    w_mat = jnp.transpose(w, (2, 3, 1, 0)).reshape(k * k * Cin, Cout)
    y = _matmul_layer(x_col, w_mat, bn=bn, slope=slope)
    return y.reshape(N, Ho, Wo, Cout)


# ----------------------------------------------------------------------------
# Encoder parameters + forward
# ----------------------------------------------------------------------------
def make_encoder_params(key, image_size, latent_size, num_channels, ndf,
                        n_extra_layers=0):
    assert image_size % 16 == 0, "isize has to be a multiple of 16"
    params = {}
    key, k = jax.random.split(key)
    params["initial"] = 0.05 * jax.random.normal(
        k, (ndf, num_channels, 4, 4), jnp.float32)
    csize, cndf = image_size // 2, ndf
    extra = []
    for _ in range(n_extra_layers):
        key, k = jax.random.split(key)
        extra.append(0.05 * jax.random.normal(k, (cndf, cndf, 3, 3), jnp.float32))
    params["extra"] = extra
    pyramid = []
    while csize > 4:
        key, k = jax.random.split(key)
        pyramid.append(0.05 * jax.random.normal(
            k, (cndf * 2, cndf, 4, 4), jnp.float32))
        cndf *= 2
        csize //= 2
    params["pyramid"] = pyramid
    key, k = jax.random.split(key)
    params["final"] = 0.05 * jax.random.normal(
        k, (latent_size, cndf, 4, 4), jnp.float32)
    return params


@jax.jit
def encoder_forward(x_nchw, params):
    y = jnp.transpose(x_nchw, (0, 2, 3, 1))                      # NCHW -> NHWC
    y = conv_layer(y, params["initial"], stride=2, pad=1, bn=False, slope=LRELU_SLOPE)
    for w in params["extra"]:
        y = conv_layer(y, w, stride=1, pad=1, bn=True, slope=LRELU_SLOPE)
    for w in params["pyramid"]:
        y = conv_layer(y, w, stride=2, pad=1, bn=True, slope=LRELU_SLOPE)
    y = conv_layer(y, params["final"], stride=1, pad=0, bn=False, slope=None)
    return jnp.transpose(y, (0, 3, 1, 2))                        # (N, nz, 1, 1)


# ----------------------------------------------------------------------------
# Pure-JAX f32 reference (PyTorch semantics) for the correctness check
# ----------------------------------------------------------------------------
def _conv_ref(x, w, stride, pad):
    return jax.lax.conv_general_dilated(
        x, w, window_strides=(stride, stride), padding=[(pad, pad)] * 2,
        dimension_numbers=("NCHW", "OIHW", "NCHW"))


def _bn_ref(x, eps=BN_EPS):
    mean = jnp.mean(x, axis=(0, 2, 3), keepdims=True)
    var = jnp.mean((x - mean) ** 2, axis=(0, 2, 3), keepdims=True)
    return (x - mean) / jnp.sqrt(var + eps)


def _lrelu_ref(x):
    return jnp.where(x >= 0.0, x, LRELU_SLOPE * x)


def reference_forward(x, params):
    y = _lrelu_ref(_conv_ref(x, params["initial"], 2, 1))
    for w in params["extra"]:
        y = _lrelu_ref(_bn_ref(_conv_ref(y, w, 1, 1)))
    for w in params["pyramid"]:
        y = _lrelu_ref(_bn_ref(_conv_ref(y, w, 2, 1)))
    return _conv_ref(y, params["final"], 1, 0)


# ----------------------------------------------------------------------------
if __name__ == "__main__":
    image_size, latent_size, num_channels, ndf, batch = 16, 32, 3, 8, 2
    n_extra_layers = 1

    key = jax.random.PRNGKey(0)
    kp, kx = jax.random.split(key)
    params = make_encoder_params(kp, image_size, latent_size, num_channels, ndf,
                                 n_extra_layers)
    x = jax.random.normal(kx, (batch, num_channels, image_size, image_size),
                          jnp.float32)

    out = jax.block_until_ready(encoder_forward(x, params))
    assert out.shape == (batch, latent_size, 1, 1), out.shape

    ref = jax.block_until_ready(reference_forward(x, params))
    # Tolerance loosened vs the f32 reference because the kernel uses bf16 MXU operands
    # (f32 accumulation); per-layer bf16 operand rounding accumulates to ~1-2% relative.
    np.testing.assert_allclose(np.asarray(out), np.asarray(ref),
                               rtol=5e-2, atol=5e-2)
    print("KERNEL_OK")
</pallas_src>

<mosaic_0001>
module attributes {stable_mosaic.version = 11 : i64} {
  func.func @matmul_act_kernel(%arg0: i32, %arg1: i32, %arg2: memref<128x128xbf16, #tpu.memory_space<vmem>>, %arg3: memref<128x128xbf16, #tpu.memory_space<vmem>>, %arg4: memref<128x128xf32, #tpu.memory_space<vmem>>, %arg5: memref<128x128xf32, #tpu.memory_space<vmem>>) attributes {dimension_semantics = [#tpu.dimension_semantics<parallel>, #tpu.dimension_semantics<arbitrary>], iteration_bounds = array<i64: 1, 1>, scalar_prefetch = 0 : i64, scratch_operands = 1 : i64, tpu.core_type = #tpu.core_type<tc>, window_params = [{transform_indices = @transform_0, window_bounds = array<i64: 128, 128>}, {transform_indices = @transform_1, window_bounds = array<i64: 128, 128>}, {transform_indices = @transform_2, window_bounds = array<i64: 128, 128>}]} {
    %c0_i32 = arith.constant 0 : i32
    %0 = arith.cmpi eq, %arg1, %c0_i32 : i32
    %1 = arith.extui %0 : i1 to i32
    %c0_i32_0 = arith.constant 0 : i32
    %2 = arith.cmpi ne, %1, %c0_i32_0 : i32
    scf.if %2 {
      %cst_10 = arith.constant 0.000000e+00 : f32
      %12 = vector.broadcast %cst_10 : f32 to vector<128x128xf32>
      %c0_11 = arith.constant 0 : index
      %c0_12 = arith.constant 0 : index
      %13 = vector.load %arg5[%c0_11, %c0_12] : memref<128x128xf32, #tpu.memory_space<vmem>>, vector<128x128xf32>
      tpu.vector_store %arg5[%c0_11, %c0_12], %12 {strides = array<i32>} : memref<128x128xf32, #tpu.memory_space<vmem>>, vector<128x128xf32>,
    } else {
    }
    %c0 = arith.constant 0 : index
    %c0_1 = arith.constant 0 : index
    %3 = vector.load %arg5[%c0, %c0_1] : memref<128x128xf32, #tpu.memory_space<vmem>>, vector<128x128xf32>
    %c0_2 = arith.constant 0 : index
    %c0_3 = arith.constant 0 : index
    %4 = vector.load %arg2[%c0_2, %c0_3] : memref<128x128xbf16, #tpu.memory_space<vmem>>, vector<128x128xbf16>
    %c0_4 = arith.constant 0 : index
    %c0_5 = arith.constant 0 : index
    %5 = vector.load %arg3[%c0_4, %c0_5] : memref<128x128xbf16, #tpu.memory_space<vmem>>, vector<128x128xbf16>
    %cst = arith.constant dense<0.000000e+00> : vector<128x128xf32>
    %6 = tpu.matmul %4, %5, %cst {dimension_numbers = #tpu.dot_dimension_numbers<[1], [0], [0], [1], [0, 0, 1, 1], [], []>} : vector<128x128xbf16>, vector<128x128xbf16>, vector<128x128xf32> -> vector<128x128xf32>
    %7 = arith.addf %3, %6 : vector<128x128xf32>
    %c0_6 = arith.constant 0 : index
    %c0_7 = arith.constant 0 : index
    %8 = vector.load %arg5[%c0_6, %c0_7] : memref<128x128xf32, #tpu.memory_space<vmem>>, vector<128x128xf32>
    tpu.vector_store %arg5[%c0_6, %c0_7], %7 {strides = array<i32>} : memref<128x128xf32, #tpu.memory_space<vmem>>, vector<128x128xf32>,
    %c0_i32_8 = arith.constant 0 : i32
    %9 = arith.cmpi eq, %arg1, %c0_i32_8 : i32
    %10 = arith.extui %9 : i1 to i32
    %c0_i32_9 = arith.constant 0 : i32
    %11 = arith.cmpi ne, %10, %c0_i32_9 : i32
    scf.if %11 {
      %c0_10 = arith.constant 0 : index
      %c0_11 = arith.constant 0 : index
      %12 = vector.load %arg5[%c0_10, %c0_11] : memref<128x128xf32, #tpu.memory_space<vmem>>, vector<128x128xf32>
      %cst_12 = arith.constant 0.000000e+00 : f32
      %13 = vector.broadcast %cst_12 : f32 to vector<128x128xf32>
      %14 = arith.cmpf oge, %12, %13 : vector<128x128xf32>
      %cst_13 = arith.constant 2.000000e-01 : f32
      %15 = vector.broadcast %cst_13 : f32 to vector<128x128xf32>
      %16 = arith.mulf %15, %12 : vector<128x128xf32>
      %17 = arith.select %14, %12, %16 : vector<128x128xi1>, vector<128x128xf32>
      %c0_14 = arith.constant 0 : index
      %c0_15 = arith.constant 0 : index
      %18 = vector.load %arg4[%c0_14, %c0_15] : memref<128x128xf32, #tpu.memory_space<vmem>>, vector<128x128xf32>
      tpu.vector_store %arg4[%c0_14, %c0_15], %17 {strides = array<i32>} : memref<128x128xf32, #tpu.memory_space<vmem>>, vector<128x128xf32>,
    } else {
    }
    return
  }
  func.func @transform_0(%arg0: i32, %arg1: i32) -> (i32, i32) {
    %c0_i32 = arith.constant 0 : i32
    return %arg0, %arg1 : i32, i32
  }
  func.func @transform_1(%arg0: i32, %arg1: i32) -> (i32, i32) {
    %c0_i32 = arith.constant 0 : i32
    %c0_i32_0 = arith.constant 0 : i32
    return %arg1, %c0_i32 : i32, i32
  }
  func.func @transform_2(%arg0: i32, %arg1: i32) -> (i32, i32) {
    %c0_i32 = arith.constant 0 : i32
    %c0_i32_0 = arith.constant 0 : i32
    return %arg0, %c0_i32 : i32, i32
  }
}

module attributes {stable_mosaic.version = 11 : i64} {
  func.func @matmul_stats_kernel(%arg0: i32, %arg1: i32, %arg2: memref<128x128xbf16, #tpu.memory_space<vmem>>, %arg3: memref<128x128xbf16, #tpu.memory_space<vmem>>, %arg4: memref<128x128xf32, #tpu.memory_space<vmem>>, %arg5: memref<1x2x128xf32, #tpu.memory_space<vmem>>, %arg6: memref<128x128xf32, #tpu.memory_space<vmem>>) attributes {dimension_semantics = [#tpu.dimension_semantics<parallel>, #tpu.dimension_semantics<arbitrary>], iteration_bounds = array<i64: 1, 1>, scalar_prefetch = 0 : i64, scratch_operands = 1 : i64, tpu.core_type = #tpu.core_type<tc>, window_params = [{transform_indices = @transform_0, window_bounds = array<i64: 128, 128>}, {transform_indices = @transform_1, window_bounds = array<i64: 128, 128>}, {transform_indices = @transform_2, window_bounds = array<i64: 128, 128>}, {transform_indices = @transform_3, window_bounds = array<i64: 1, 2, 128>}]} {
    %c0_i32 = arith.constant 0 : i32
    %0 = arith.cmpi eq, %arg1, %c0_i32 : i32
    %1 = arith.extui %0 : i1 to i32
    %c0_i32_0 = arith.constant 0 : i32
    %2 = arith.cmpi ne, %1, %c0_i32_0 : i32
    scf.if %2 {
      %cst_10 = arith.constant 0.000000e+00 : f32
      %12 = vector.broadcast %cst_10 : f32 to vector<128x128xf32>
      %c0_11 = arith.constant 0 : index
      %c0_12 = arith.constant 0 : index
      %13 = vector.load %arg6[%c0_11, %c0_12] : memref<128x128xf32, #tpu.memory_space<vmem>>, vector<128x128xf32>
      tpu.vector_store %arg6[%c0_11, %c0_12], %12 {strides = array<i32>} : memref<128x128xf32, #tpu.memory_space<vmem>>, vector<128x128xf32>,
    } else {
    }
    %c0 = arith.constant 0 : index
    %c0_1 = arith.constant 0 : index
    %3 = vector.load %arg6[%c0, %c0_1] : memref<128x128xf32, #tpu.memory_space<vmem>>, vector<128x128xf32>
    %c0_2 = arith.constant 0 : index
    %c0_3 = arith.constant 0 : index
    %4 = vector.load %arg2[%c0_2, %c0_3] : memref<128x128xbf16, #tpu.memory_space<vmem>>, vector<128x128xbf16>
    %c0_4 = arith.constant 0 : index
    %c0_5 = arith.constant 0 : index
    %5 = vector.load %arg3[%c0_4, %c0_5] : memref<128x128xbf16, #tpu.memory_space<vmem>>, vector<128x128xbf16>
    %cst = arith.constant dense<0.000000e+00> : vector<128x128xf32>
    %6 = tpu.matmul %4, %5, %cst {dimension_numbers = #tpu.dot_dimension_numbers<[1], [0], [0], [1], [0, 0, 1, 1], [], []>} : vector<128x128xbf16>, vector<128x128xbf16>, vector<128x128xf32> -> vector<128x128xf32>
    %7 = arith.addf %3, %6 : vector<128x128xf32>
    %c0_6 = arith.constant 0 : index
    %c0_7 = arith.constant 0 : index
    %8 = vector.load %arg6[%c0_6, %c0_7] : memref<128x128xf32, #tpu.memory_space<vmem>>, vector<128x128xf32>
    tpu.vector_store %arg6[%c0_6, %c0_7], %7 {strides = array<i32>} : memref<128x128xf32, #tpu.memory_space<vmem>>, vector<128x128xf32>,
    %c0_i32_8 = arith.constant 0 : i32
    %9 = arith.cmpi eq, %arg1, %c0_i32_8 : i32
    %10 = arith.extui %9 : i1 to i32
    %c0_i32_9 = arith.constant 0 : i32
    %11 = arith.cmpi ne, %10, %c0_i32_9 : i32
    scf.if %11 {
      %c0_10 = arith.constant 0 : index
      %c0_11 = arith.constant 0 : index
      %12 = vector.load %arg6[%c0_10, %c0_11] : memref<128x128xf32, #tpu.memory_space<vmem>>, vector<128x128xf32>
      %c0_12 = arith.constant 0 : index
      %c0_13 = arith.constant 0 : index
      %13 = vector.load %arg4[%c0_12, %c0_13] : memref<128x128xf32, #tpu.memory_space<vmem>>, vector<128x128xf32>
      tpu.vector_store %arg4[%c0_12, %c0_13], %12 {strides = array<i32>} : memref<128x128xf32, #tpu.memory_space<vmem>>, vector<128x128xf32>,
      %cst_14 = arith.constant dense<0.000000e+00> : vector<128xf32>
      %14 = vector.multi_reduction <add>, %12, %cst_14 [0] : vector<128x128xf32> to vector<128xf32>
      %15 = vector.shape_cast %14 : vector<128xf32> to vector<1x128xf32>
      %16 = arith.mulf %12, %12 : vector<128x128xf32>
      %cst_15 = arith.constant dense<0.000000e+00> : vector<128xf32>
      %17 = vector.multi_reduction <add>, %16, %cst_15 [0] : vector<128x128xf32> to vector<128xf32>
      %18 = vector.shape_cast %17 : vector<128xf32> to vector<1x128xf32>
      %19 = tpu.concatenate %15, %18 in 0 : vector<1x128xf32>, vector<1x128xf32> -> vector<2x128xf32>
      %c0_16 = arith.constant 0 : index
      %c0_17 = arith.constant 0 : index
      %c0_18 = arith.constant 0 : index
      %20 = vector.load %arg5[%c0_16, %c0_17, %c0_18] : memref<1x2x128xf32, #tpu.memory_space<vmem>>, vector<1x2x128xf32>
      %21 = vector.shape_cast %20 : vector<1x2x128xf32> to vector<2x128xf32>
      %22 = vector.shape_cast %19 : vector<2x128xf32> to vector<1x2x128xf32>
      tpu.vector_store %arg5[%c0_16, %c0_17, %c0_18], %22 {strides = array<i32>} : memref<1x2x128xf32, #tpu.memory_space<vmem>>, vector<1x2x128xf32>,
    } else {
    }
    return
  }
  func.func @transform_0(%arg0: i32, %arg1: i32) -> (i32, i32) {
    %c0_i32 = arith.constant 0 : i32
    return %arg0, %arg1 : i32, i32
  }
  func.func @transform_1(%arg0: i32, %arg1: i32) -> (i32, i32) {
    %c0_i32 = arith.constant 0 : i32
    %c0_i32_0 = arith.constant 0 : i32
    return %arg1, %c0_i32 : i32, i32
  }
  func.func @transform_2(%arg0: i32, %arg1: i32) -> (i32, i32) {
    %c0_i32 = arith.constant 0 : i32
    %c0_i32_0 = arith.constant 0 : i32
    return %arg0, %c0_i32 : i32, i32
  }
  func.func @transform_3(%arg0: i32, %arg1: i32) -> (i32, i32, i32) {
    %c0_i32 = arith.constant 0 : i32
    %c0_i32_0 = arith.constant 0 : i32
    %c0_i32_1 = arith.constant 0 : i32
    return %arg0, %c0_i32, %c0_i32_0 : i32, i32, i32
  }
}

module attributes {stable_mosaic.version = 11 : i64} {
  func.func @bn_act_kernel(%arg0: i32, %arg1: memref<128x128xf32, #tpu.memory_space<vmem>>, %arg2: memref<1x128xf32, #tpu.memory_space<vmem>>, %arg3: memref<1x128xf32, #tpu.memory_space<vmem>>, %arg4: memref<128x128xf32, #tpu.memory_space<vmem>>) attributes {dimension_semantics = [#tpu.dimension_semantics<parallel>], iteration_bounds = array<i64: 1>, scalar_prefetch = 0 : i64, scratch_operands = 0 : i64, tpu.core_type = #tpu.core_type<tc>, window_params = [{transform_indices = @transform_0, window_bounds = array<i64: 128, 128>}, {pipeline_mode = #tpu.pipeline_mode<synchronous>, transform_indices = @transform_1, window_bounds = array<i64: 1, 128>}, {pipeline_mode = #tpu.pipeline_mode<synchronous>, transform_indices = @transform_2, window_bounds = array<i64: 1, 128>}, {transform_indices = @transform_3, window_bounds = array<i64: 128, 128>}]} {
    %c0 = arith.constant 0 : index
    %c0_0 = arith.constant 0 : index
    %0 = vector.load %arg1[%c0, %c0_0] : memref<128x128xf32, #tpu.memory_space<vmem>>, vector<128x128xf32>
    %c0_1 = arith.constant 0 : index
    %c0_2 = arith.constant 0 : index
    %1 = vector.load %arg2[%c0_1, %c0_2] : memref<1x128xf32, #tpu.memory_space<vmem>>, vector<1x128xf32>
    %2 = vector.broadcast %1 : vector<1x128xf32> to vector<128x128xf32>
    %3 = arith.mulf %0, %2 : vector<128x128xf32>
    %c0_3 = arith.constant 0 : index
    %c0_4 = arith.constant 0 : index
    %4 = vector.load %arg3[%c0_3, %c0_4] : memref<1x128xf32, #tpu.memory_space<vmem>>, vector<1x128xf32>
    %5 = vector.broadcast %4 : vector<1x128xf32> to vector<128x128xf32>
    %6 = arith.addf %3, %5 : vector<128x128xf32>
    %cst = arith.constant 0.000000e+00 : f32
    %7 = vector.broadcast %cst : f32 to vector<128x128xf32>
    %8 = arith.cmpf oge, %6, %7 : vector<128x128xf32>
    %cst_5 = arith.constant 2.000000e-01 : f32
    %9 = vector.broadcast %cst_5 : f32 to vector<128x128xf32>
    %10 = arith.mulf %9, %6 : vector<128x128xf32>
    %11 = arith.select %8, %6, %10 : vector<128x128xi1>, vector<128x128xf32>
    %c0_6 = arith.constant 0 : index
    %c0_7 = arith.constant 0 : index
    %12 = vector.load %arg4[%c0_6, %c0_7] : memref<128x128xf32, #tpu.memory_space<vmem>>, vector<128x128xf32>
    tpu.vector_store %arg4[%c0_6, %c0_7], %11 {strides = array<i32>} : memref<128x128xf32, #tpu.memory_space<vmem>>, vector<128x128xf32>,
    return
  }
  func.func @transform_0(%arg0: i32) -> (i32, i32) {
    %c0_i32 = arith.constant 0 : i32
    %c0_i32_0 = arith.constant 0 : i32
    return %arg0, %c0_i32 : i32, i32
  }
  func.func @transform_1(%arg0: i32) -> (i32, i32) {
    %c0_i32 = arith.constant 0 : i32
    %c0_i32_0 = arith.constant 0 : i32
    %c0_i32_1 = arith.constant 0 : i32
    return %c0_i32, %c0_i32_0 : i32, i32
  }
  func.func @transform_2(%arg0: i32) -> (i32, i32) {
    %c0_i32 = arith.constant 0 : i32
    %c0_i32_0 = arith.constant 0 : i32
    %c0_i32_1 = arith.constant 0 : i32
    return %c0_i32, %c0_i32_0 : i32, i32
  }
  func.func @transform_3(%arg0: i32) -> (i32, i32) {
    %c0_i32 = arith.constant 0 : i32
    %c0_i32_0 = arith.constant 0 : i32
    return %arg0, %c0_i32 : i32, i32
  }
}

module attributes {stable_mosaic.version = 11 : i64} {
  func.func @matmul_stats_kernel(%arg0: i32, %arg1: i32, %arg2: memref<32x128xbf16, #tpu.memory_space<vmem>>, %arg3: memref<128x128xbf16, #tpu.memory_space<vmem>>, %arg4: memref<32x128xf32, #tpu.memory_space<vmem>>, %arg5: memref<1x2x128xf32, #tpu.memory_space<vmem>>, %arg6: memref<32x128xf32, #tpu.memory_space<vmem>>) attributes {dimension_semantics = [#tpu.dimension_semantics<parallel>, #tpu.dimension_semantics<arbitrary>], iteration_bounds = array<i64: 1, 1>, scalar_prefetch = 0 : i64, scratch_operands = 1 : i64, tpu.core_type = #tpu.core_type<tc>, window_params = [{transform_indices = @transform_0, window_bounds = array<i64: 32, 128>}, {transform_indices = @transform_1, window_bounds = array<i64: 128, 128>}, {transform_indices = @transform_2, window_bounds = array<i64: 32, 128>}, {transform_indices = @transform_3, window_bounds = array<i64: 1, 2, 128>}]} {
    %c0_i32 = arith.constant 0 : i32
    %0 = arith.cmpi eq, %arg1, %c0_i32 : i32
    %1 = arith.extui %0 : i1 to i32
    %c0_i32_0 = arith.constant 0 : i32
    %2 = arith.cmpi ne, %1, %c0_i32_0 : i32
    scf.if %2 {
      %cst_10 = arith.constant 0.000000e+00 : f32
      %12 = vector.broadcast %cst_10 : f32 to vector<32x128xf32>
      %c0_11 = arith.constant 0 : index
      %c0_12 = arith.constant 0 : index
      %13 = vector.load %arg6[%c0_11, %c0_12] : memref<32x128xf32, #tpu.memory_space<vmem>>, vector<32x128xf32>
      tpu.vector_store %arg6[%c0_11, %c0_12], %12 {strides = array<i32>} : memref<32x128xf32, #tpu.memory_space<vmem>>, vector<32x128xf32>,
    } else {
    }
    %c0 = arith.constant 0 : index
    %c0_1 = arith.constant 0 : index
    %3 = vector.load %arg6[%c0, %c0_1] : memref<32x128xf32, #tpu.memory_space<vmem>>, vector<32x128xf32>
    %c0_2 = arith.constant 0 : index
    %c0_3 = arith.constant 0 : index
    %4 = vector.load %arg2[%c0_2, %c0_3] : memref<32x128xbf16, #tpu.memory_space<vmem>>, vector<32x128xbf16>
    %c0_4 = arith.constant 0 : index
    %c0_5 = arith.constant 0 : index
    %5 = vector.load %arg3[%c0_4, %c0_5] : memref<128x128xbf16, #tpu.memory_space<vmem>>, vector<128x128xbf16>
    %cst = arith.constant dense<0.000000e+00> : vector<32x128xf32>
    %6 = tpu.matmul %4, %5, %cst {dimension_numbers = #tpu.dot_dimension_numbers<[1], [0], [0], [1], [0, 0, 1, 1], [], []>} : vector<32x128xbf16>, vector<128x128xbf16>, vector<32x128xf32> -> vector<32x128xf32>
    %7 = arith.addf %3, %6 : vector<32x128xf32>
    %c0_6 = arith.constant 0 : index
    %c0_7 = arith.constant 0 : index
    %8 = vector.load %arg6[%c0_6, %c0_7] : memref<32x128xf32, #tpu.memory_space<vmem>>, vector<32x128xf32>
    tpu.vector_store %arg6[%c0_6, %c0_7], %7 {strides = array<i32>} : memref<32x128xf32, #tpu.memory_space<vmem>>, vector<32x128xf32>,
    %c0_i32_8 = arith.constant 0 : i32
    %9 = arith.cmpi eq, %arg1, %c0_i32_8 : i32
    %10 = arith.extui %9 : i1 to i32
    %c0_i32_9 = arith.constant 0 : i32
    %11 = arith.cmpi ne, %10, %c0_i32_9 : i32
    scf.if %11 {
      %c0_10 = arith.constant 0 : index
      %c0_11 = arith.constant 0 : index
      %12 = vector.load %arg6[%c0_10, %c0_11] : memref<32x128xf32, #tpu.memory_space<vmem>>, vector<32x128xf32>
      %c0_12 = arith.constant 0 : index
      %c0_13 = arith.constant 0 : index
      %13 = vector.load %arg4[%c0_12, %c0_13] : memref<32x128xf32, #tpu.memory_space<vmem>>, vector<32x128xf32>
      tpu.vector_store %arg4[%c0_12, %c0_13], %12 {strides = array<i32>} : memref<32x128xf32, #tpu.memory_space<vmem>>, vector<32x128xf32>,
      %cst_14 = arith.constant dense<0.000000e+00> : vector<128xf32>
      %14 = vector.multi_reduction <add>, %12, %cst_14 [0] : vector<32x128xf32> to vector<128xf32>
      %15 = vector.shape_cast %14 : vector<128xf32> to vector<1x128xf32>
      %16 = arith.mulf %12, %12 : vector<32x128xf32>
      %cst_15 = arith.constant dense<0.000000e+00> : vector<128xf32>
      %17 = vector.multi_reduction <add>, %16, %cst_15 [0] : vector<32x128xf32> to vector<128xf32>
      %18 = vector.shape_cast %17 : vector<128xf32> to vector<1x128xf32>
      %19 = tpu.concatenate %15, %18 in 0 : vector<1x128xf32>, vector<1x128xf32> -> vector<2x128xf32>
      %c0_16 = arith.constant 0 : index
      %c0_17 = arith.constant 0 : index
      %c0_18 = arith.constant 0 : index
      %20 = vector.load %arg5[%c0_16, %c0_17, %c0_18] : memref<1x2x128xf32, #tpu.memory_space<vmem>>, vector<1x2x128xf32>
      %21 = vector.shape_cast %20 : vector<1x2x128xf32> to vector<2x128xf32>
      %22 = vector.shape_cast %19 : vector<2x128xf32> to vector<1x2x128xf32>
      tpu.vector_store %arg5[%c0_16, %c0_17, %c0_18], %22 {strides = array<i32>} : memref<1x2x128xf32, #tpu.memory_space<vmem>>, vector<1x2x128xf32>,
    } else {
    }
    return
  }
  func.func @transform_0(%arg0: i32, %arg1: i32) -> (i32, i32) {
    %c0_i32 = arith.constant 0 : i32
    return %arg0, %arg1 : i32, i32
  }
  func.func @transform_1(%arg0: i32, %arg1: i32) -> (i32, i32) {
    %c0_i32 = arith.constant 0 : i32
    %c0_i32_0 = arith.constant 0 : i32
    return %arg1, %c0_i32 : i32, i32
  }
  func.func @transform_2(%arg0: i32, %arg1: i32) -> (i32, i32) {
    %c0_i32 = arith.constant 0 : i32
    %c0_i32_0 = arith.constant 0 : i32
    return %arg0, %c0_i32 : i32, i32
  }
  func.func @transform_3(%arg0: i32, %arg1: i32) -> (i32, i32, i32) {
    %c0_i32 = arith.constant 0 : i32
    %c0_i32_0 = arith.constant 0 : i32
    %c0_i32_1 = arith.constant 0 : i32
    return %arg0, %c0_i32, %c0_i32_0 : i32, i32, i32
  }
}

module attributes {stable_mosaic.version = 11 : i64} {
  func.func @bn_act_kernel(%arg0: i32, %arg1: memref<32x128xf32, #tpu.memory_space<vmem>>, %arg2: memref<1x128xf32, #tpu.memory_space<vmem>>, %arg3: memref<1x128xf32, #tpu.memory_space<vmem>>, %arg4: memref<32x128xf32, #tpu.memory_space<vmem>>) attributes {dimension_semantics = [#tpu.dimension_semantics<parallel>], iteration_bounds = array<i64: 1>, scalar_prefetch = 0 : i64, scratch_operands = 0 : i64, tpu.core_type = #tpu.core_type<tc>, window_params = [{transform_indices = @transform_0, window_bounds = array<i64: 32, 128>}, {pipeline_mode = #tpu.pipeline_mode<synchronous>, transform_indices = @transform_1, window_bounds = array<i64: 1, 128>}, {pipeline_mode = #tpu.pipeline_mode<synchronous>, transform_indices = @transform_2, window_bounds = array<i64: 1, 128>}, {transform_indices = @transform_3, window_bounds = array<i64: 32, 128>}]} {
    %c0 = arith.constant 0 : index
    %c0_0 = arith.constant 0 : index
    %0 = vector.load %arg1[%c0, %c0_0] : memref<32x128xf32, #tpu.memory_space<vmem>>, vector<32x128xf32>
    %c0_1 = arith.constant 0 : index
    %c0_2 = arith.constant 0 : index
    %1 = vector.load %arg2[%c0_1, %c0_2] : memref<1x128xf32, #tpu.memory_space<vmem>>, vector<1x128xf32>
    %2 = vector.broadcast %1 : vector<1x128xf32> to vector<32x128xf32>
    %3 = arith.mulf %0, %2 : vector<32x128xf32>
    %c0_3 = arith.constant 0 : index
    %c0_4 = arith.constant 0 : index
    %4 = vector.load %arg3[%c0_3, %c0_4] : memref<1x128xf32, #tpu.memory_space<vmem>>, vector<1x128xf32>
    %5 = vector.broadcast %4 : vector<1x128xf32> to vector<32x128xf32>
    %6 = arith.addf %3, %5 : vector<32x128xf32>
    %cst = arith.constant 0.000000e+00 : f32
    %7 = vector.broadcast %cst : f32 to vector<32x128xf32>
    %8 = arith.cmpf oge, %6, %7 : vector<32x128xf32>
    %cst_5 = arith.constant 2.000000e-01 : f32
    %9 = vector.broadcast %cst_5 : f32 to vector<32x128xf32>
    %10 = arith.mulf %9, %6 : vector<32x128xf32>
    %11 = arith.select %8, %6, %10 : vector<32x128xi1>, vector<32x128xf32>
    %c0_6 = arith.constant 0 : index
    %c0_7 = arith.constant 0 : index
    %12 = vector.load %arg4[%c0_6, %c0_7] : memref<32x128xf32, #tpu.memory_space<vmem>>, vector<32x128xf32>
    tpu.vector_store %arg4[%c0_6, %c0_7], %11 {strides = array<i32>} : memref<32x128xf32, #tpu.memory_space<vmem>>, vector<32x128xf32>,
    return
  }
  func.func @transform_0(%arg0: i32) -> (i32, i32) {
    %c0_i32 = arith.constant 0 : i32
    %c0_i32_0 = arith.constant 0 : i32
    return %arg0, %c0_i32 : i32, i32
  }
  func.func @transform_1(%arg0: i32) -> (i32, i32) {
    %c0_i32 = arith.constant 0 : i32
    %c0_i32_0 = arith.constant 0 : i32
    %c0_i32_1 = arith.constant 0 : i32
    return %c0_i32, %c0_i32_0 : i32, i32
  }
  func.func @transform_2(%arg0: i32) -> (i32, i32) {
    %c0_i32 = arith.constant 0 : i32
    %c0_i32_0 = arith.constant 0 : i32
    %c0_i32_1 = arith.constant 0 : i32
    return %c0_i32, %c0_i32_0 : i32, i32
  }
  func.func @transform_3(%arg0: i32) -> (i32, i32) {
    %c0_i32 = arith.constant 0 : i32
    %c0_i32_0 = arith.constant 0 : i32
    return %arg0, %c0_i32 : i32, i32
  }
}

module attributes {stable_mosaic.version = 11 : i64} {
  func.func @matmul_act_kernel(%arg0: i32, %arg1: i32, %arg2: memref<8x256xbf16, #tpu.memory_space<vmem>>, %arg3: memref<256x128xbf16, #tpu.memory_space<vmem>>, %arg4: memref<8x128xf32, #tpu.memory_space<vmem>>, %arg5: memref<8x128xf32, #tpu.memory_space<vmem>>) attributes {dimension_semantics = [#tpu.dimension_semantics<parallel>, #tpu.dimension_semantics<arbitrary>], iteration_bounds = array<i64: 1, 1>, scalar_prefetch = 0 : i64, scratch_operands = 1 : i64, tpu.core_type = #tpu.core_type<tc>, window_params = [{transform_indices = @transform_0, window_bounds = array<i64: 8, 256>}, {transform_indices = @transform_1, window_bounds = array<i64: 256, 128>}, {transform_indices = @transform_2, window_bounds = array<i64: 8, 128>}]} {
    %c0_i32 = arith.constant 0 : i32
    %0 = arith.cmpi eq, %arg1, %c0_i32 : i32
    %1 = arith.extui %0 : i1 to i32
    %c0_i32_0 = arith.constant 0 : i32
    %2 = arith.cmpi ne, %1, %c0_i32_0 : i32
    scf.if %2 {
      %cst_10 = arith.constant 0.000000e+00 : f32
      %12 = vector.broadcast %cst_10 : f32 to vector<8x128xf32>
      %c0_11 = arith.constant 0 : index
      %c0_12 = arith.constant 0 : index
      %13 = vector.load %arg5[%c0_11, %c0_12] : memref<8x128xf32, #tpu.memory_space<vmem>>, vector<8x128xf32>
      tpu.vector_store %arg5[%c0_11, %c0_12], %12 {strides = array<i32>} : memref<8x128xf32, #tpu.memory_space<vmem>>, vector<8x128xf32>,
    } else {
    }
    %c0 = arith.constant 0 : index
    %c0_1 = arith.constant 0 : index
    %3 = vector.load %arg5[%c0, %c0_1] : memref<8x128xf32, #tpu.memory_space<vmem>>, vector<8x128xf32>
    %c0_2 = arith.constant 0 : index
    %c0_3 = arith.constant 0 : index
    %4 = vector.load %arg2[%c0_2, %c0_3] : memref<8x256xbf16, #tpu.memory_space<vmem>>, vector<8x256xbf16>
    %c0_4 = arith.constant 0 : index
    %c0_5 = arith.constant 0 : index
    %5 = vector.load %arg3[%c0_4, %c0_5] : memref<256x128xbf16, #tpu.memory_space<vmem>>, vector<256x128xbf16>
    %cst = arith.constant dense<0.000000e+00> : vector<8x128xf32>
    %6 = tpu.matmul %4, %5, %cst {dimension_numbers = #tpu.dot_dimension_numbers<[1], [0], [0], [1], [0, 0, 1, 1], [], []>} : vector<8x256xbf16>, vector<256x128xbf16>, vector<8x128xf32> -> vector<8x128xf32>
    %7 = arith.addf %3, %6 : vector<8x128xf32>
    %c0_6 = arith.constant 0 : index
    %c0_7 = arith.constant 0 : index
    %8 = vector.load %arg5[%c0_6, %c0_7] : memref<8x128xf32, #tpu.memory_space<vmem>>, vector<8x128xf32>
    tpu.vector_store %arg5[%c0_6, %c0_7], %7 {strides = array<i32>} : memref<8x128xf32, #tpu.memory_space<vmem>>, vector<8x128xf32>,
    %c0_i32_8 = arith.constant 0 : i32
    %9 = arith.cmpi eq, %arg1, %c0_i32_8 : i32
    %10 = arith.extui %9 : i1 to i32
    %c0_i32_9 = arith.constant 0 : i32
    %11 = arith.cmpi ne, %10, %c0_i32_9 : i32
    scf.if %11 {
      %c0_10 = arith.constant 0 : index
      %c0_11 = arith.constant 0 : index
      %12 = vector.load %arg5[%c0_10, %c0_11] : memref<8x128xf32, #tpu.memory_space<vmem>>, vector<8x128xf32>
      %c0_12 = arith.constant 0 : index
      %c0_13 = arith.constant 0 : index
      %13 = vector.load %arg4[%c0_12, %c0_13] : memref<8x128xf32, #tpu.memory_space<vmem>>, vector<8x128xf32>
      tpu.vector_store %arg4[%c0_12, %c0_13], %12 {strides = array<i32>} : memref<8x128xf32, #tpu.memory_space<vmem>>, vector<8x128xf32>,
    } else {
    }
    return
  }
  func.func @transform_0(%arg0: i32, %arg1: i32) -> (i32, i32) {
    %c0_i32 = arith.constant 0 : i32
    return %arg0, %arg1 : i32, i32
  }
  func.func @transform_1(%arg0: i32, %arg1: i32) -> (i32, i32) {
    %c0_i32 = arith.constant 0 : i32
    %c0_i32_0 = arith.constant 0 : i32
    return %arg1, %c0_i32 : i32, i32
  }
  func.func @transform_2(%arg0: i32, %arg1: i32) -> (i32, i32) {
    %c0_i32 = arith.constant 0 : i32
    %c0_i32_0 = arith.constant 0 : i32
    return %arg0, %c0_i32 : i32, i32
  }
}

</mosaic_0001>

<llo_original>
// kernel: encoder_forward.6
$region0: #{encoder_forward.6}
  #allocation0 [shape = 'u32[]', space=smem, size = 0x4, offset = 0x4, fixed_abs, tag = 'smem constant byte address 0x4 - core index']
  #allocation1 [shape = 'u32[72,128]{1,0:T(1,128)}', space=vmem, size = 0x9000, scoped, tag = 'internal scratch']
  #allocation2 [shape = 'f32[128,128]{1,0:T(8,128)}', space=vmem, size = 0x10000, scoped, tag = 'scratch operand']
  %s0 = inlined_call_operand.vmem [shape: bf16[128,128], index: 0, kind: input, shape index: {}]
  %s1 = inlined_call_operand.vmem [shape: bf16[128,128], index: 1, kind: input, shape index: {}]
  %s2 = inlined_call_operand.vmem [shape: f32[128,128], index: 2, kind: output, shape index: {}]
  %s3 = sld [smem:[#allocation0]]
  $region26: #{encoder_forward.6} parent=0
    _
  %s5 = ssub.s32 1, %s3
  %s6 = scalar_select 0, %s5, %s3
  // Predicated region
  $region2: #{encoder_forward.6} parent=0 // pred_check
    _
  $region3: #{encoder_forward.6} parent=0 // pred_check_branch
    %8 = sbr.rel (0) target = $region5
  $region4: #{encoder_forward.6} parent=0 // pred_region
    _
  $region5: #{encoder_forward.6} parent=0 // pred_fallthru
    _
  // Predicated region
  $region6: #{encoder_forward.6} parent=0 // pred_check
    _
  $region7: #{encoder_forward.6} parent=0 // pred_check_branch
    %10 = sbr.rel (0) target = $region9
  $region8: #{encoder_forward.6} parent=0 // pred_region
    _
  $region9: #{encoder_forward.6} parent=0 // pred_fallthru
    _
  %p11 = scmp.eq.s32.totalorder 0, 0
  // Predicated region
  $region10: #{encoder_forward.6} parent=0 // pred_check
    %p12 = pneg %p11
  $region11: #{encoder_forward.6} parent=0 // pred_check_branch
    %14 = sbr.rel (%p12) target = $region13
  $region12: #{encoder_forward.6} parent=0 // pred_region
    %15 = vst [vmem:[#allocation2] sm:$0xff] 0.0
    %16 = vst [vmem:[#allocation2 + $0x8] sm:$0xff] 0.0
    %17 = vst [vmem:[#allocation2 + $0x10] sm:$0xff] 0.0
    %18 = vst [vmem:[#allocation2 + $0x18] sm:$0xff] 0.0
    %19 = vst [vmem:[#allocation2 + $0x20] sm:$0xff] 0.0
    %20 = vst [vmem:[#allocation2 + $0x28] sm:$0xff] 0.0
    %21 = vst [vmem:[#allocation2 + $0x30] sm:$0xff] 0.0
    %22 = vst [vmem:[#allocation2 + $0x38] sm:$0xff] 0.0
    %23 = vst [vmem:[#allocation2 + $0x40] sm:$0xff] 0.0
    %24 = vst [vmem:[#allocation2 + $0x48] sm:$0xff] 0.0
    %25 = vst [vmem:[#allocation2 + $0x50] sm:$0xff] 0.0
    %26 = vst [vmem:[#allocation2 + $0x58] sm:$0xff] 0.0
    %27 = vst [vmem:[#allocation2 + $0x60] sm:$0xff] 0.0
    %28 = vst [vmem:[#allocation2 + $0x68] sm:$0xff] 0.0
    %29 = vst [vmem:[#allocation2 + $0x70] sm:$0xff] 0.0
    %30 = vst [vmem:[#allocation2 + $0x78] sm:$0xff] 0.0
  $region13: #{encoder_forward.6} parent=0 // pred_fallthru
    _
  %v31 = vld [vmem:[#allocation2] sm:$0xff]
  %v32 = vld [vmem:[#allocation2 + $0x8] sm:$0xff]
  %v33 = vld [vmem:[#allocation2 + $0x10] sm:$0xff]
  %v34 = vld [vmem:[#allocation2 + $0x18] sm:$0xff]
  %v35 = vld [vmem:[#allocation2 + $0x20] sm:$0xff]
  %v36 = vld [vmem:[#allocation2 + $0x28] sm:$0xff]
  %v37 = vld [vmem:[#allocation2 + $0x30] sm:$0xff]
  %v38 = vld [vmem:[#allocation2 + $0x38] sm:$0xff]
  %v39 = vld [vmem:[#allocation2 + $0x40] sm:$0xff]
  %v40 = vld [vmem:[#allocation2 + $0x48] sm:$0xff]
  %v41 = vld [vmem:[#allocation2 + $0x50] sm:$0xff]
  %v42 = vld [vmem:[#allocation2 + $0x58] sm:$0xff]
  %v43 = vld [vmem:[#allocation2 + $0x60] sm:$0xff]
  %v44 = vld [vmem:[#allocation2 + $0x68] sm:$0xff]
  %v45 = vld [vmem:[#allocation2 + $0x70] sm:$0xff]
  %v46 = vld [vmem:[#allocation2 + $0x78] sm:$0xff]
  %v47 = vld [vmem:[%s0] sm:$0xf]
  %v48 = vld [vmem:[%s0 + $0x4] sm:$0xf]
  %v49 = vld [vmem:[%s0 + $0x8] sm:$0xf]
  %v50 = vld [vmem:[%s0 + $0xc] sm:$0xf]
  %v51 = vld [vmem:[%s0 + $0x10] sm:$0xf]
  %v52 = vld [vmem:[%s0 + $0x14] sm:$0xf]
  %v53 = vld [vmem:[%s0 + $0x18] sm:$0xf]
  %v54 = vld [vmem:[%s0 + $0x1c] sm:$0xf]
  %v55 = vld [vmem:[%s0 + $0x20] sm:$0xf]
  %v56 = vld [vmem:[%s0 + $0x24] sm:$0xf]
  %v57 = vld [vmem:[%s0 + $0x28] sm:$0xf]
  %v58 = vld [vmem:[%s0 + $0x2c] sm:$0xf]
  %v59 = vld [vmem:[%s0 + $0x30] sm:$0xf]
  %v60 = vld [vmem:[%s0 + $0x34] sm:$0xf]
  %v61 = vld [vmem:[%s0 + $0x38] sm:$0xf]
  %v62 = vld [vmem:[%s0 + $0x3c] sm:$0xf]
  %v63 = vld [vmem:[%s1] sm:$0xf]
  %v64 = vld [vmem:[%s1 + $0x4] sm:$0xf]
  %v65 = vld [vmem:[%s1 + $0x8] sm:$0xf]
  %v66 = vld [vmem:[%s1 + $0xc] sm:$0xf]
  %v67 = vld [vmem:[%s1 + $0x10] sm:$0xf]
  %v68 = vld [vmem:[%s1 + $0x14] sm:$0xf]
  %v69 = vld [vmem:[%s1 + $0x18] sm:$0xf]
  %v70 = vld [vmem:[%s1 + $0x1c] sm:$0xf]
  %v71 = vld [vmem:[%s1 + $0x20] sm:$0xf]
  %v72 = vld [vmem:[%s1 + $0x24] sm:$0xf]
  %v73 = vld [vmem:[%s1 + $0x28] sm:$0xf]
  %v74 = vld [vmem:[%s1 + $0x2c] sm:$0xf]
  %v75 = vld [vmem:[%s1 + $0x30] sm:$0xf]
  %v76 = vld [vmem:[%s1 + $0x34] sm:$0xf]
  %v77 = vld [vmem:[%s1 + $0x38] sm:$0xf]
  %v78 = vld [vmem:[%s1 + $0x3c] sm:$0xf]
  %v95 = vunpack.c.l.b16 %v47
  %v96 = vunpack.c.l.b16 %v48
  %v97 = vunpack.c.l.b16 %v49
  %v98 = vunpack.c.l.b16 %v50
  %v99 = vunpack.c.l.b16 %v51
  %v100 = vunpack.c.l.b16 %v52
  %v101 = vunpack.c.l.b16 %v53
  %v102 = vunpack.c.l.b16 %v54
  %v103 = vunpack.c.l.b16 %v55
  %v104 = vunpack.c.l.b16 %v56
  %v105 = vunpack.c.l.b16 %v57
  %v106 = vunpack.c.l.b16 %v58
  %v107 = vunpack.c.l.b16 %v59
  %v108 = vunpack.c.l.b16 %v60
  %v109 = vunpack.c.l.b16 %v61
  %v110 = vunpack.c.l.b16 %v62
  %v111 = vpack.c.b16 %v96, %v95
  %v112 = vpack.c.b16 %v98, %v97
  %v113 = vpack.c.b16 %v100, %v99
  %v114 = vpack.c.b16 %v102, %v101
  %v115 = vpack.c.b16 %v104, %v103
  %v116 = vpack.c.b16 %v106, %v105
  %v117 = vpack.c.b16 %v108, %v107
  %v118 = vpack.c.b16 %v110, %v109
  %v143 = vunpack.c.l.b16 %v63
  %v144 = vunpack.c.l.b16 %v64
  %v145 = vunpack.c.l.b16 %v65
  %v146 = vunpack.c.l.b16 %v66
  %v147 = vunpack.c.l.b16 %v67
  %v148 = vunpack.c.l.b16 %v68
  %v149 = vunpack.c.l.b16 %v69
  %v150 = vunpack.c.l.b16 %v70
  %v151 = vunpack.c.l.b16 %v71
  %v152 = vunpack.c.l.b16 %v72
  %v153 = vunpack.c.l.b16 %v73
  %v154 = vunpack.c.l.b16 %v74
  %v155 = vunpack.c.l.b16 %v75
  %v156 = vunpack.c.l.b16 %v76
  %v157 = vunpack.c.l.b16 %v77
  %v158 = vunpack.c.l.b16 %v78
  %v159 = vpack.c.b16 %v144, %v143
  %v160 = vpack.c.b16 %v146, %v145
  %v161 = vpack.c.b16 %v148, %v147
  %v162 = vpack.c.b16 %v150, %v149
  %v163 = vpack.c.b16 %v152, %v151
  %v164 = vpack.c.b16 %v154, %v153
  %v165 = vpack.c.b16 %v156, %v155
  %v166 = vpack.c.b16 %v158, %v157
  %175 = vmatpush.bf16.msra.mxu0 %v166
  %176 = vmatpush.bf16.msra.mxu0 %v165
  %177 = vmatpush.bf16.msra.mxu0 %v164
  %178 = vmatpush.bf16.msra.mxu0 %v163
  %179 = vmatpush.bf16.msra.mxu0 %v162
  %180 = vmatpush.bf16.msra.mxu0 %v161
  %181 = vmatpush.bf16.msra.mxu0 %v160
  %182 = vmatpush.bf16.msra.mxu0 %v159
  %183 = vmatmul.bf16.gmra.mxu0 %v111
  %v184 = vpop.f32.mrf.mxu0
  %v185 = vadd.f32 0.0, %v184
  %v186 = vpop.f32.mrf.mxu0
  %v187 = vadd.f32 0.0, %v186
  %188 = vmatmul.bf16.gmra.mxu0 %v112
  %v189 = vpop.f32.mrf.mxu0
  %v190 = vadd.f32 0.0, %v189
  %v191 = vpop.f32.mrf.mxu0
  %v192 = vadd.f32 0.0, %v191
  %193 = vmatmul.bf16.gmra.mxu0 %v113
  %v194 = vpop.f32.mrf.mxu0
  %v195 = vadd.f32 0.0, %v194
  %v196 = vpop.f32.mrf.mxu0
  %v197 = vadd.f32 0.0, %v196
  %198 = vmatmul.bf16.gmra.mxu0 %v114
  %v199 = vpop.f32.mrf.mxu0
  %v200 = vadd.f32 0.0, %v199
  %v201 = vpop.f32.mrf.mxu0
  %v202 = vadd.f32 0.0, %v201
  %203 = vmatmul.bf16.gmra.mxu0 %v115
  %v204 = vpop.f32.mrf.mxu0
  %v205 = vadd.f32 0.0, %v204
  %v206 = vpop.f32.mrf.mxu0
  %v207 = vadd.f32 0.0, %v206
  %208 = vmatmul.bf16.gmra.mxu0 %v116
  %v209 = vpop.f32.mrf.mxu0
  %v210 = vadd.f32 0.0, %v209
  %v211 = vpop.f32.mrf.mxu0
  %v212 = vadd.f32 0.0, %v211
  %213 = vmatmul.bf16.gmra.mxu0 %v117
  %v214 = vpop.f32.mrf.mxu0
  %v215 = vadd.f32 0.0, %v214
  %v216 = vpop.f32.mrf.mxu0
  %v217 = vadd.f32 0.0, %v216
  %218 = vmatmul.bf16.gmra.mxu0 %v118
  %v219 = vpop.f32.mrf.mxu0
  %v220 = vadd.f32 0.0, %v219
  %v221 = vpop.f32.mrf.mxu0
  %v222 = vadd.f32 0.0, %v221
  %223 = vdwg.mxu0
  %v224 = vadd.f32 %v31, %v185
  %v225 = vadd.f32 %v32, %v187
  %v226 = vadd.f32 %v33, %v190
  %v227 = vadd.f32 %v34, %v192
  %v228 = vadd.f32 %v35, %v195
  %v229 = vadd.f32 %v36, %v197
  %v230 = vadd.f32 %v37, %v200
  %v231 = vadd.f32 %v38, %v202
  %v232 = vadd.f32 %v39, %v205
  %v233 = vadd.f32 %v40, %v207
  %v234 = vadd.f32 %v41, %v210
  %v235 = vadd.f32 %v42, %v212
  %v236 = vadd.f32 %v43, %v215
  %v237 = vadd.f32 %v44, %v217
  %v238 = vadd.f32 %v45, %v220
  %v239 = vadd.f32 %v46, %v222
  %240 = vst [vmem:[#allocation2] sm:$0xff] %v224
  %241 = vst [vmem:[#allocation2 + $0x8] sm:$0xff] %v225
  %242 = vst [vmem:[#allocation2 + $0x10] sm:$0xff] %v226
  %243 = vst [vmem:[#allocation2 + $0x18] sm:$0xff] %v227
  %244 = vst [vmem:[#allocation2 + $0x20] sm:$0xff] %v228
  %245 = vst [vmem:[#allocation2 + $0x28] sm:$0xff] %v229
  %246 = vst [vmem:[#allocation2 + $0x30] sm:$0xff] %v230
  %247 = vst [vmem:[#allocation2 + $0x38] sm:$0xff] %v231
  %248 = vst [vmem:[#allocation2 + $0x40] sm:$0xff] %v232
  %249 = vst [vmem:[#allocation2 + $0x48] sm:$0xff] %v233
  %250 = vst [vmem:[#allocation2 + $0x50] sm:$0xff] %v234
  %251 = vst [vmem:[#allocation2 + $0x58] sm:$0xff] %v235
  %252 = vst [vmem:[#allocation2 + $0x60] sm:$0xff] %v236
  %253 = vst [vmem:[#allocation2 + $0x68] sm:$0xff] %v237
  %254 = vst [vmem:[#allocation2 + $0x70] sm:$0xff] %v238
  %255 = vst [vmem:[#allocation2 + $0x78] sm:$0xff] %v239
  // Predicated region
  $region14: #{encoder_forward.6} parent=0 // pred_check
    %p256 = pneg %p11
  $region15: #{encoder_forward.6} parent=0 // pred_check_branch
    %258 = sbr.rel (%p256) target = $region17
  $region16: #{encoder_forward.6} parent=0 // pred_region
    %v259 = vld [vmem:[#allocation2] sm:$0xff]
    %v260 = vld [vmem:[#allocation2 + $0x8] sm:$0xff]
    %v261 = vld [vmem:[#allocation2 + $0x10] sm:$0xff]
    %v262 = vld [vmem:[#allocation2 + $0x18] sm:$0xff]
    %v263 = vld [vmem:[#allocation2 + $0x20] sm:$0xff]
    %v264 = vld [vmem:[#allocation2 + $0x28] sm:$0xff]
    %v265 = vld [vmem:[#allocation2 + $0x30] sm:$0xff]
    %v266 = vld [vmem:[#allocation2 + $0x38] sm:$0xff]
    %v267 = vld [vmem:[#allocation2 + $0x40] sm:$0xff]
    %v268 = vld [vmem:[#allocation2 + $0x48] sm:$0xff]
    %v269 = vld [vmem:[#allocation2 + $0x50] sm:$0xff]
    %v270 = vld [vmem:[#allocation2 + $0x58] sm:$0xff]
    %v271 = vld [vmem:[#allocation2 + $0x60] sm:$0xff]
    %v272 = vld [vmem:[#allocation2 + $0x68] sm:$0xff]
    %v273 = vld [vmem:[#allocation2 + $0x70] sm:$0xff]
    %v274 = vld [vmem:[#allocation2 + $0x78] sm:$0xff]
    %vm275 = vcmp.ge.f32.partialorder %v259, 0.0
    %vm276 = vcmp.ge.f32.partialorder %v260, 0.0
    %vm277 = vcmp.ge.f32.partialorder %v261, 0.0
    %vm278 = vcmp.ge.f32.partialorder %v262, 0.0
    %vm279 = vcmp.ge.f32.partialorder %v263, 0.0
    %vm280 = vcmp.ge.f32.partialorder %v264, 0.0
    %vm281 = vcmp.ge.f32.partialorder %v265, 0.0
    %vm282 = vcmp.ge.f32.partialorder %v266, 0.0
    %vm283 = vcmp.ge.f32.partialorder %v267, 0.0
    %vm284 = vcmp.ge.f32.partialorder %v268, 0.0
    %vm285 = vcmp.ge.f32.partialorder %v269, 0.0
    %vm286 = vcmp.ge.f32.partialorder %v270, 0.0
    %vm287 = vcmp.ge.f32.partialorder %v271, 0.0
    %vm288 = vcmp.ge.f32.partialorder %v272, 0.0
    %vm289 = vcmp.ge.f32.partialorder %v273, 0.0
    %vm290 = vcmp.ge.f32.partialorder %v274, 0.0
    %v291 = vmul.f32 %v259, 0.2
    %v292 = vmul.f32 %v260, 0.2
    %v293 = vmul.f32 %v261, 0.2
    %v294 = vmul.f32 %v262, 0.2
    %v295 = vmul.f32 %v263, 0.2
    %v296 = vmul.f32 %v264, 0.2
    %v297 = vmul.f32 %v265, 0.2
    %v298 = vmul.f32 %v266, 0.2
    %v299 = vmul.f32 %v267, 0.2
    %v300 = vmul.f32 %v268, 0.2
    %v301 = vmul.f32 %v269, 0.2
    %v302 = vmul.f32 %v270, 0.2
    %v303 = vmul.f32 %v271, 0.2
    %v304 = vmul.f32 %v272, 0.2
    %v305 = vmul.f32 %v273, 0.2
    %v306 = vmul.f32 %v274, 0.2
    %v307 = vsel %vm275, %v259, %v291
    %v308 = vsel %vm276, %v260, %v292
    %v309 = vsel %vm277, %v261, %v293
    %v310 = vsel %vm278, %v262, %v294
    %v311 = vsel %vm279, %v263, %v295
    %v312 = vsel %vm280, %v264, %v296
    %v313 = vsel %vm281, %v265, %v297
    %v314 = vsel %vm282, %v266, %v298
    %v315 = vsel %vm283, %v267, %v299
    %v316 = vsel %vm284, %v268, %v300
    %v317 = vsel %vm285, %v269, %v301
    %v318 = vsel %vm286, %v270, %v302
    %v319 = vsel %vm287, %v271, %v303
    %v320 = vsel %vm288, %v272, %v304
    %v321 = vsel %vm289, %v273, %v305
    %v322 = vsel %vm290, %v274, %v306
    %323 = vst [vmem:[%s2] sm:$0xff] %v307
    %324 = vst [vmem:[%s2 + $0x8] sm:$0xff] %v308
    %325 = vst [vmem:[%s2 + $0x10] sm:$0xff] %v309
    %326 = vst [vmem:[%s2 + $0x18] sm:$0xff] %v310
    %327 = vst [vmem:[%s2 + $0x20] sm:$0xff] %v311
    %328 = vst [vmem:[%s2 + $0x28] sm:$0xff] %v312
    %329 = vst [vmem:[%s2 + $0x30] sm:$0xff] %v313
    %330 = vst [vmem:[%s2 + $0x38] sm:$0xff] %v314
    %331 = vst [vmem:[%s2 + $0x40] sm:$0xff] %v315
    %332 = vst [vmem:[%s2 + $0x48] sm:$0xff] %v316
    %333 = vst [vmem:[%s2 + $0x50] sm:$0xff] %v317
    %334 = vst [vmem:[%s2 + $0x58] sm:$0xff] %v318
    %335 = vst [vmem:[%s2 + $0x60] sm:$0xff] %v319
    %336 = vst [vmem:[%s2 + $0x68] sm:$0xff] %v320
    %337 = vst [vmem:[%s2 + $0x70] sm:$0xff] %v321
    %338 = vst [vmem:[%s2 + $0x78] sm:$0xff] %v322
  $region17: #{encoder_forward.6} parent=0 // pred_fallthru
    _
  // Predicated region
  $region18: #{encoder_forward.6} parent=0 // pred_check
    _
  $region19: #{encoder_forward.6} parent=0 // pred_check_branch
    %340 = sbr.rel (0) target = $region21
  $region20: #{encoder_forward.6} parent=0 // pred_region
    _
  $region21: #{encoder_forward.6} parent=0 // pred_fallthru
    _
  // Predicated region
  $region22: #{encoder_forward.6} parent=0 // pred_check
    _
  $region23: #{encoder_forward.6} parent=0 // pred_check_branch
    %342 = sbr.rel (0) target = $region25
  $region24: #{encoder_forward.6} parent=0 // pred_region
    _
  $region25: #{encoder_forward.6} parent=0 // pred_fallthru
    _

// kernel: encoder_forward.7
$region0: #{encoder_forward.7}
  #allocation0 [shape = 'u32[]', space=smem, size = 0x4, offset = 0x4, fixed_abs, tag = 'smem constant byte address 0x4 - core index']
  #allocation1 [shape = 'u32[72,128]{1,0:T(1,128)}', space=vmem, size = 0x9000, scoped, tag = 'internal scratch']
  #allocation2 [shape = 'f32[128,128]{1,0:T(8,128)}', space=vmem, size = 0x10000, scoped, tag = 'scratch operand']
  %s0 = inlined_call_operand.vmem [shape: bf16[128,128], index: 0, kind: input, shape index: {}]
  %s1 = inlined_call_operand.vmem [shape: bf16[128,128], index: 1, kind: input, shape index: {}]
  %s2 = inlined_call_operand.vmem [shape: f32[128,128], index: 2, kind: output, shape index: {0}]
  %s3 = inlined_call_operand.vmem [shape: f32[1,2,128], index: 3, kind: output, shape index: {1}]
  %4 = xla_tuple %s2, %s3
  %s5 = sld [smem:[#allocation0]]
  $region34: #{encoder_forward.7} parent=0
    _
  %s7 = ssub.s32 1, %s5
  %s8 = scalar_select 0, %s7, %s5
  // Predicated region
  $region2: #{encoder_forward.7} parent=0 // pred_check
    _
  $region3: #{encoder_forward.7} parent=0 // pred_check_branch
    %10 = sbr.rel (0) target = $region5
  $region4: #{encoder_forward.7} parent=0 // pred_region
    _
  $region5: #{encoder_forward.7} parent=0 // pred_fallthru
    _
  // Predicated region
  $region6: #{encoder_forward.7} parent=0 // pred_check
    _
  $region7: #{encoder_forward.7} parent=0 // pred_check_branch
    %12 = sbr.rel (0) target = $region9
  $region8: #{encoder_forward.7} parent=0 // pred_region
    _
  $region9: #{encoder_forward.7} parent=0 // pred_fallthru
    _
  %p13 = scmp.eq.s32.totalorder 0, 0
  // Predicated region
  $region10: #{encoder_forward.7} parent=0 // pred_check
    %p14 = pneg %p13
  $region11: #{encoder_forward.7} parent=0 // pred_check_branch
    %16 = sbr.rel (%p14) target = $region13
  $region12: #{encoder_forward.7} parent=0 // pred_region
    %17 = vst [vmem:[#allocation2] sm:$0xff] 0.0
    %18 = vst [vmem:[#allocation2 + $0x8] sm:$0xff] 0.0
    %19 = vst [vmem:[#allocation2 + $0x10] sm:$0xff] 0.0
    %20 = vst [vmem:[#allocation2 + $0x18] sm:$0xff] 0.0
    %21 = vst [vmem:[#allocation2 + $0x20] sm:$0xff] 0.0
    %22 = vst [vmem:[#allocation2 + $0x28] sm:$0xff] 0.0
    %23 = vst [vmem:[#allocation2 + $0x30] sm:$0xff] 0.0
    %24 = vst [vmem:[#allocation2 + $0x38] sm:$0xff] 0.0
    %25 = vst [vmem:[#allocation2 + $0x40] sm:$0xff] 0.0
    %26 = vst [vmem:[#allocation2 + $0x48] sm:$0xff] 0.0
    %27 = vst [vmem:[#allocation2 + $0x50] sm:$0xff] 0.0
    %28 = vst [vmem:[#allocation2 + $0x58] sm:$0xff] 0.0
    %29 = vst [vmem:[#allocation2 + $0x60] sm:$0xff] 0.0
    %30 = vst [vmem:[#allocation2 + $0x68] sm:$0xff] 0.0
    %31 = vst [vmem:[#allocation2 + $0x70] sm:$0xff] 0.0
    %32 = vst [vmem:[#allocation2 + $0x78] sm:$0xff] 0.0
  $region13: #{encoder_forward.7} parent=0 // pred_fallthru
    _
  %v33 = vld [vmem:[#allocation2] sm:$0xff]
  %v34 = vld [vmem:[#allocation2 + $0x8] sm:$0xff]
  %v35 = vld [vmem:[#allocation2 + $0x10] sm:$0xff]
  %v36 = vld [vmem:[#allocation2 + $0x18] sm:$0xff]
  %v37 = vld [vmem:[#allocation2 + $0x20] sm:$0xff]
  %v38 = vld [vmem:[#allocation2 + $0x28] sm:$0xff]
  %v39 = vld [vmem:[#allocation2 + $0x30] sm:$0xff]
  %v40 = vld [vmem:[#allocation2 + $0x38] sm:$0xff]
  %v41 = vld [vmem:[#allocation2 + $0x40] sm:$0xff]
  %v42 = vld [vmem:[#allocation2 + $0x48] sm:$0xff]
  %v43 = vld [vmem:[#allocation2 + $0x50] sm:$0xff]
  %v44 = vld [vmem:[#allocation2 + $0x58] sm:$0xff]
  %v45 = vld [vmem:[#allocation2 + $0x60] sm:$0xff]
  %v46 = vld [vmem:[#allocation2 + $0x68] sm:$0xff]
  %v47 = vld [vmem:[#allocation2 + $0x70] sm:$0xff]
  %v48 = vld [vmem:[#allocation2 + $0x78] sm:$0xff]
  %v49 = vld [vmem:[%s0] sm:$0xf]
  %v50 = vld [vmem:[%s0 + $0x4] sm:$0xf]
  %v51 = vld [vmem:[%s0 + $0x8] sm:$0xf]
  %v52 = vld [vmem:[%s0 + $0xc] sm:$0xf]
  %v53 = vld [vmem:[%s0 + $0x10] sm:$0xf]
  %v54 = vld [vmem:[%s0 + $0x14] sm:$0xf]
  %v55 = vld [vmem:[%s0 + $0x18] sm:$0xf]
  %v56 = vld [vmem:[%s0 + $0x1c] sm:$0xf]
  %v57 = vld [vmem:[%s0 + $0x20] sm:$0xf]
  %v58 = vld [vmem:[%s0 + $0x24] sm:$0xf]
  %v59 = vld [vmem:[%s0 + $0x28] sm:$0xf]
  %v60 = vld [vmem:[%s0 + $0x2c] sm:$0xf]
  %v61 = vld [vmem:[%s0 + $0x30] sm:$0xf]
  %v62 = vld [vmem:[%s0 + $0x34] sm:$0xf]
  %v63 = vld [vmem:[%s0 + $0x38] sm:$0xf]
  %v64 = vld [vmem:[%s0 + $0x3c] sm:$0xf]
  %v65 = vld [vmem:[%s1] sm:$0xf]
  %v66 = vld [vmem:[%s1 + $0x4] sm:$0xf]
  %v67 = vld [vmem:[%s1 + $0x8] sm:$0xf]
  %v68 = vld [vmem:[%s1 + $0xc] sm:$0xf]
  %v69 = vld [vmem:[%s1 + $0x10] sm:$0xf]
  %v70 = vld [vmem:[%s1 + $0x14] sm:$0xf]
  %v71 = vld [vmem:[%s1 + $0x18] sm:$0xf]
  %v72 = vld [vmem:[%s1 + $0x1c] sm:$0xf]
  %v73 = vld [vmem:[%s1 + $0x20] sm:$0xf]
  %v74 = vld [vmem:[%s1 + $0x24] sm:$0xf]
  %v75 = vld [vmem:[%s1 + $0x28] sm:$0xf]
  %v76 = vld [vmem:[%s1 + $0x2c] sm:$0xf]
  %v77 = vld [vmem:[%s1 + $0x30] sm:$0xf]
  %v78 = vld [vmem:[%s1 + $0x34] sm:$0xf]
  %v79 = vld [vmem:[%s1 + $0x38] sm:$0xf]
  %v80 = vld [vmem:[%s1 + $0x3c] sm:$0xf]
  %v97 = vunpack.c.l.b16 %v49
  %v98 = vunpack.c.l.b16 %v50
  %v99 = vunpack.c.l.b16 %v51
  %v100 = vunpack.c.l.b16 %v52
  %v101 = vunpack.c.l.b16 %v53
  %v102 = vunpack.c.l.b16 %v54
  %v103 = vunpack.c.l.b16 %v55
  %v104 = vunpack.c.l.b16 %v56
  %v105 = vunpack.c.l.b16 %v57
  %v106 = vunpack.c.l.b16 %v58
  %v107 = vunpack.c.l.b16 %v59
  %v108 = vunpack.c.l.b16 %v60
  %v109 = vunpack.c.l.b16 %v61
  %v110 = vunpack.c.l.b16 %v62
  %v111 = vunpack.c.l.b16 %v63
  %v112 = vunpack.c.l.b16 %v64
  %v113 = vpack.c.b16 %v98, %v97
  %v114 = vpack.c.b16 %v100, %v99
  %v115 = vpack.c.b16 %v102, %v101
  %v116 = vpack.c.b16 %v104, %v103
  %v117 = vpack.c.b16 %v106, %v105
  %v118 = vpack.c.b16 %v108, %v107
  %v119 = vpack.c.b16 %v110, %v109
  %v120 = vpack.c.b16 %v112, %v111
  %v145 = vunpack.c.l.b16 %v65
  %v146 = vunpack.c.l.b16 %v66
  %v147 = vunpack.c.l.b16 %v67
  %v148 = vunpack.c.l.b16 %v68
  %v149 = vunpack.c.l.b16 %v69
  %v150 = vunpack.c.l.b16 %v70
  %v151 = vunpack.c.l.b16 %v71
  %v152 = vunpack.c.l.b16 %v72
  %v153 = vunpack.c.l.b16 %v73
  %v154 = vunpack.c.l.b16 %v74
  %v155 = vunpack.c.l.b16 %v75
  %v156 = vunpack.c.l.b16 %v76
  %v157 = vunpack.c.l.b16 %v77
  %v158 = vunpack.c.l.b16 %v78
  %v159 = vunpack.c.l.b16 %v79
  %v160 = vunpack.c.l.b16 %v80
  %v161 = vpack.c.b16 %v146, %v145
  %v162 = vpack.c.b16 %v148, %v147
  %v163 = vpack.c.b16 %v150, %v149
  %v164 = vpack.c.b16 %v152, %v151
  %v165 = vpack.c.b16 %v154, %v153
  %v166 = vpack.c.b16 %v156, %v155
  %v167 = vpack.c.b16 %v158, %v157
  %v168 = vpack.c.b16 %v160, %v159
  %177 = vmatpush.bf16.msra.mxu0 %v168
  %178 = vmatpush.bf16.msra.mxu0 %v167
  %179 = vmatpush.bf16.msra.mxu0 %v166
  %180 = vmatpush.bf16.msra.mxu0 %v165
  %181 = vmatpush.bf16.msra.mxu0 %v164
  %182 = vmatpush.bf16.msra.mxu0 %v163
  %183 = vmatpush.bf16.msra.mxu0 %v162
  %184 = vmatpush.bf16.msra.mxu0 %v161
  %185 = vmatmul.bf16.gmra.mxu0 %v113
  %v186 = vpop.f32.mrf.mxu0
  %v187 = vadd.f32 0.0, %v186
  %v188 = vpop.f32.mrf.mxu0
  %v189 = vadd.f32 0.0, %v188
  %190 = vmatmul.bf16.gmra.mxu0 %v114
  %v191 = vpop.f32.mrf.mxu0
  %v192 = vadd.f32 0.0, %v191
  %v193 = vpop.f32.mrf.mxu0
  %v194 = vadd.f32 0.0, %v193
  %195 = vmatmul.bf16.gmra.mxu0 %v115
  %v196 = vpop.f32.mrf.mxu0
  %v197 = vadd.f32 0.0, %v196
  %v198 = vpop.f32.mrf.mxu0
  %v199 = vadd.f32 0.0, %v198
  %200 = vmatmul.bf16.gmra.mxu0 %v116
  %v201 = vpop.f32.mrf.mxu0
  %v202 = vadd.f32 0.0, %v201
  %v203 = vpop.f32.mrf.mxu0
  %v204 = vadd.f32 0.0, %v203
  %205 = vmatmul.bf16.gmra.mxu0 %v117
  %v206 = vpop.f32.mrf.mxu0
  %v207 = vadd.f32 0.0, %v206
  %v208 = vpop.f32.mrf.mxu0
  %v209 = vadd.f32 0.0, %v208
  %210 = vmatmul.bf16.gmra.mxu0 %v118
  %v211 = vpop.f32.mrf.mxu0
  %v212 = vadd.f32 0.0, %v211
  %v213 = vpop.f32.mrf.mxu0
  %v214 = vadd.f32 0.0, %v213
  %215 = vmatmul.bf16.gmra.mxu0 %v119
  %v216 = vpop.f32.mrf.mxu0
  %v217 = vadd.f32 0.0, %v216
  %v218 = vpop.f32.mrf.mxu0
  %v219 = vadd.f32 0.0, %v218
  %220 = vmatmul.bf16.gmra.mxu0 %v120
  %v221 = vpop.f32.mrf.mxu0
  %v222 = vadd.f32 0.0, %v221
  %v223 = vpop.f32.mrf.mxu0
  %v224 = vadd.f32 0.0, %v223
  %225 = vdwg.mxu0
  %v226 = vadd.f32 %v33, %v187
  %v227 = vadd.f32 %v34, %v189
  %v228 = vadd.f32 %v35, %v192
  %v229 = vadd.f32 %v36, %v194
  %v230 = vadd.f32 %v37, %v197
  %v231 = vadd.f32 %v38, %v199
  %v232 = vadd.f32 %v39, %v202
  %v233 = vadd.f32 %v40, %v204
  %v234 = vadd.f32 %v41, %v207
  %v235 = vadd.f32 %v42, %v209
  %v236 = vadd.f32 %v43, %v212
  %v237 = vadd.f32 %v44, %v214
  %v238 = vadd.f32 %v45, %v217
  %v239 = vadd.f32 %v46, %v219
  %v240 = vadd.f32 %v47, %v222
  %v241 = vadd.f32 %v48, %v224
  %242 = vst [vmem:[#allocation2] sm:$0xff] %v226
  %243 = vst [vmem:[#allocation2 + $0x8] sm:$0xff] %v227
  %244 = vst [vmem:[#allocation2 + $0x10] sm:$0xff] %v228
  %245 = vst [vmem:[#allocation2 + $0x18] sm:$0xff] %v229
  %246 = vst [vmem:[#allocation2 + $0x20] sm:$0xff] %v230
  %247 = vst [vmem:[#allocation2 + $0x28] sm:$0xff] %v231
  %248 = vst [vmem:[#allocation2 + $0x30] sm:$0xff] %v232
  %249 = vst [vmem:[#allocation2 + $0x38] sm:$0xff] %v233
  %250 = vst [vmem:[#allocation2 + $0x40] sm:$0xff] %v234
  %251 = vst [vmem:[#allocation2 + $0x48] sm:$0xff] %v235
  %252 = vst [vmem:[#allocation2 + $0x50] sm:$0xff] %v236
  %253 = vst [vmem:[#allocation2 + $0x58] sm:$0xff] %v237
  %254 = vst [vmem:[#allocation2 + $0x60] sm:$0xff] %v238
  %255 = vst [vmem:[#allocation2 + $0x68] sm:$0xff] %v239
  %256 = vst [vmem:[#allocation2 + $0x70] sm:$0xff] %v240
  %257 = vst [vmem:[#allocation2 + $0x78] sm:$0xff] %v241
  // Predicated region
  $region14: #{encoder_forward.7} parent=0 // pred_check
    %p258 = pneg %p13
  $region15: #{encoder_forward.7} parent=0 // pred_check_branch
    %260 = sbr.rel (%p258) target = $region17
  $region16: #{encoder_forward.7} parent=0 // pred_region
    %v261 = vld [vmem:[#allocation2] sm:$0xff]
    %v262 = vld [vmem:[#allocation2 + $0x8] sm:$0xff]
    %v263 = vld [vmem:[#allocation2 + $0x10] sm:$0xff]
    %v264 = vld [vmem:[#allocation2 + $0x18] sm:$0xff]
    %v265 = vld [vmem:[#allocation2 + $0x20] sm:$0xff]
    %v266 = vld [vmem:[#allocation2 + $0x28] sm:$0xff]
    %v267 = vld [vmem:[#allocation2 + $0x30] sm:$0xff]
    %v268 = vld [vmem:[#allocation2 + $0x38] sm:$0xff]
    %v269 = vld [vmem:[#allocation2 + $0x40] sm:$0xff]
    %v270 = vld [vmem:[#allocation2 + $0x48] sm:$0xff]
    %v271 = vld [vmem:[#allocation2 + $0x50] sm:$0xff]
    %v272 = vld [vmem:[#allocation2 + $0x58] sm:$0xff]
    %v273 = vld [vmem:[#allocation2 + $0x60] sm:$0xff]
    %v274 = vld [vmem:[#allocation2 + $0x68] sm:$0xff]
    %v275 = vld [vmem:[#allocation2 + $0x70] sm:$0xff]
    %v276 = vld [vmem:[#allocation2 + $0x78] sm:$0xff]
    %277 = vst [vmem:[%s2] sm:$0xff] %v261
    %278 = vst [vmem:[%s2 + $0x8] sm:$0xff] %v262
    %279 = vst [vmem:[%s2 + $0x10] sm:$0xff] %v263
    %280 = vst [vmem:[%s2 + $0x18] sm:$0xff] %v264
    %281 = vst [vmem:[%s2 + $0x20] sm:$0xff] %v265
    %282 = vst [vmem:[%s2 + $0x28] sm:$0xff] %v266
    %283 = vst [vmem:[%s2 + $0x30] sm:$0xff] %v267
    %284 = vst [vmem:[%s2 + $0x38] sm:$0xff] %v268
    %285 = vst [vmem:[%s2 + $0x40] sm:$0xff] %v269
    %286 = vst [vmem:[%s2 + $0x48] sm:$0xff] %v270
    %287 = vst [vmem:[%s2 + $0x50] sm:$0xff] %v271
    %288 = vst [vmem:[%s2 + $0x58] sm:$0xff] %v272
    %289 = vst [vmem:[%s2 + $0x60] sm:$0xff] %v273
    %290 = vst [vmem:[%s2 + $0x68] sm:$0xff] %v274
    %291 = vst [vmem:[%s2 + $0x70] sm:$0xff] %v275
    %292 = vst [vmem:[%s2 + $0x78] sm:$0xff] %v276
    %v293 = vadd.f32 %v261, %v262
    %v294 = vadd.f32 %v293, %v263
    %v295 = vadd.f32 %v294, %v264
    %v296 = vadd.f32 %v295, %v265
    %v297 = vadd.f32 %v296, %v266
    %v298 = vadd.f32 %v297, %v267
    %v299 = vadd.f32 %v298, %v268
    %v300 = vadd.f32 %v299, %v269
    %v301 = vadd.f32 %v300, %v270
    %v302 = vadd.f32 %v301, %v271
    %v303 = vadd.f32 %v302, %v272
    %v304 = vadd.f32 %v303, %v273
    %v305 = vadd.f32 %v304, %v274
    %v306 = vadd.f32 %v305, %v275
    %v307 = vadd.f32 %v306, %v276
    %v308 = vrot.slane %v307, 4
    %v309 = vadd.f32 %v307, %v308
    %v310 = vrot.slane %v309, 2
    %v311 = vadd.f32 %v309, %v310
    %v312 = vrot.slane %v311, 1
    %v313 = vadd.f32 %v311, %v312
    %v314 = vmul.f32 %v261, %v261
    %v315 = vmul.f32 %v262, %v262
    %v316 = vmul.f32 %v263, %v263
    %v317 = vmul.f32 %v264, %v264
    %v318 = vmul.f32 %v265, %v265
    %v319 = vmul.f32 %v266, %v266
    %v320 = vmul.f32 %v267, %v267
    %v321 = vmul.f32 %v268, %v268
    %v322 = vmul.f32 %v269, %v269
    %v323 = vmul.f32 %v270, %v270
    %v324 = vmul.f32 %v271, %v271
    %v325 = vmul.f32 %v272, %v272
    %v326 = vmul.f32 %v273, %v273
    %v327 = vmul.f32 %v274, %v274
    %v328 = vmul.f32 %v275, %v275
    %v329 = vmul.f32 %v276, %v276
    %v330 = vadd.f32 %v314, %v315
    %v331 = vadd.f32 %v330, %v316
    %v332 = vadd.f32 %v331, %v317
    %v333 = vadd.f32 %v332, %v318
    %v334 = vadd.f32 %v333, %v319
    %v335 = vadd.f32 %v334, %v320
    %v336 = vadd.f32 %v335, %v321
    %v337 = vadd.f32 %v336, %v322
    %v338 = vadd.f32 %v337, %v323
    %v339 = vadd.f32 %v338, %v324
    %v340 = vadd.f32 %v339, %v325
    %v341 = vadd.f32 %v340, %v326
    %v342 = vadd.f32 %v341, %v327
    %v343 = vadd.f32 %v342, %v328
    %v344 = vadd.f32 %v343, %v329
    %v345 = vrot.slane %v344, 4
    %v346 = vadd.f32 %v344, %v345
    %v347 = vrot.slane %v346, 2
    %v348 = vadd.f32 %v346, %v347
    %v349 = vrot.slane %v348, 1
    %v350 = vadd.f32 %v348, %v349
    %vm351 = vcmask 1040384
    %v352 = vsel %vm351, %v313, %v350
    %353 = vst [vmem:[%s3] sm:$0x3] %v352
  $region17: #{encoder_forward.7} parent=0 // pred_fallthru
    _
  // Predicated region
  $region18: #{encoder_forward.7} parent=0 // pred_check
    _
  $region19: #{encoder_forward.7} parent=0 // pred_check_branch
    %355 = sbr.rel (0) target = $region21
  $region20: #{encoder_forward.7} parent=0 // pred_region
    _
  $region21: #{encoder_forward.7} parent=0 // pred_fallthru
    _
  // Predicated region
  $region22: #{encoder_forward.7} parent=0 // pred_check
    _
  $region23: #{encoder_forward.7} parent=0 // pred_check_branch
    %357 = sbr.rel (0) target = $region25
  $region24: #{encoder_forward.7} parent=0 // pred_region
    _
  $region25: #{encoder_forward.7} parent=0 // pred_fallthru
    _
  // Predicated region
  $region26: #{encoder_forward.7} parent=0 // pred_check
    _
  $region27: #{encoder_forward.7} parent=0 // pred_check_branch
    %359 = sbr.rel (0) target = $region29
  $region28: #{encoder_forward.7} parent=0 // pred_region
    _
  $region29: #{encoder_forward.7} parent=0 // pred_fallthru
    _
  // Predicated region
  $region30: #{encoder_forward.7} parent=0 // pred_check
    _
  $region31: #{encoder_forward.7} parent=0 // pred_check_branch
    %361 = sbr.rel (0) target = $region33
  $region32: #{encoder_forward.7} parent=0 // pred_region
    _
  $region33: #{encoder_forward.7} parent=0 // pred_fallthru
    _

// kernel: encoder_forward.8
$region0: #{encoder_forward.8}
  #allocation0 [shape = 'u32[]', space=smem, size = 0x4, offset = 0x4, fixed_abs, tag = 'smem constant byte address 0x4 - core index']
  #allocation1 [shape = 'u32[72,128]{1,0:T(1,128)}', space=vmem, size = 0x9000, scoped, tag = 'internal scratch']
  %s0 = inlined_call_operand.vmem [shape: f32[128,128], index: 0, kind: input, shape index: {}]
  %s1 = inlined_call_operand.vmem [shape: f32[1,128], index: 1, kind: input, shape index: {}]
  %s2 = inlined_call_operand.vmem [shape: f32[1,128], index: 2, kind: input, shape index: {}]
  %s3 = inlined_call_operand.vmem [shape: f32[128,128], index: 3, kind: output, shape index: {}]
  %s4 = sld [smem:[#allocation0]]
  $region22: #{encoder_forward.8} parent=0
    _
  %s6 = ssub.s32 1, %s4
  %s7 = scalar_select 0, %s6, %s4
  // Predicated region
  $region2: #{encoder_forward.8} parent=0 // pred_check
    _
  $region3: #{encoder_forward.8} parent=0 // pred_check_branch
    %9 = sbr.rel (0) target = $region5
  $region4: #{encoder_forward.8} parent=0 // pred_region
    _
  $region5: #{encoder_forward.8} parent=0 // pred_fallthru
    _
  // Predicated region
  $region6: #{encoder_forward.8} parent=0 // pred_check
    _
  $region7: #{encoder_forward.8} parent=0 // pred_check_branch
    %11 = sbr.rel (0) target = $region9
  $region8: #{encoder_forward.8} parent=0 // pred_region
    _
  $region9: #{encoder_forward.8} parent=0 // pred_fallthru
    _
  // Predicated region
  $region10: #{encoder_forward.8} parent=0 // pred_check
    _
  $region11: #{encoder_forward.8} parent=0 // pred_check_branch
    %13 = sbr.rel (0) target = $region13
  $region12: #{encoder_forward.8} parent=0 // pred_region
    _
  $region13: #{encoder_forward.8} parent=0 // pred_fallthru
    _
  %v14 = vld [vmem:[%s0] sm:$0xff]
  %v15 = vld [vmem:[%s0 + $0x8] sm:$0xff]
  %v16 = vld [vmem:[%s0 + $0x10] sm:$0xff]
  %v17 = vld [vmem:[%s0 + $0x18] sm:$0xff]
  %v18 = vld [vmem:[%s0 + $0x20] sm:$0xff]
  %v19 = vld [vmem:[%s0 + $0x28] sm:$0xff]
  %v20 = vld [vmem:[%s0 + $0x30] sm:$0xff]
  %v21 = vld [vmem:[%s0 + $0x38] sm:$0xff]
  %v22 = vld [vmem:[%s0 + $0x40] sm:$0xff]
  %v23 = vld [vmem:[%s0 + $0x48] sm:$0xff]
  %v24 = vld [vmem:[%s0 + $0x50] sm:$0xff]
  %v25 = vld [vmem:[%s0 + $0x58] sm:$0xff]
  %v26 = vld [vmem:[%s0 + $0x60] sm:$0xff]
  %v27 = vld [vmem:[%s0 + $0x68] sm:$0xff]
  %v28 = vld [vmem:[%s0 + $0x70] sm:$0xff]
  %v29 = vld [vmem:[%s0 + $0x78] sm:$0xff]
  %v30 = vld [vmem:[%s1] sm:$0x1]
  %v32 = vperm.slane %v30, 0
  %v34 = vmul.f32 %v14, %v32
  %v35 = vmul.f32 %v15, %v32
  %v36 = vmul.f32 %v16, %v32
  %v37 = vmul.f32 %v17, %v32
  %v38 = vmul.f32 %v18, %v32
  %v39 = vmul.f32 %v19, %v32
  %v40 = vmul.f32 %v20, %v32
  %v41 = vmul.f32 %v21, %v32
  %v42 = vmul.f32 %v22, %v32
  %v43 = vmul.f32 %v23, %v32
  %v44 = vmul.f32 %v24, %v32
  %v45 = vmul.f32 %v25, %v32
  %v46 = vmul.f32 %v26, %v32
  %v47 = vmul.f32 %v27, %v32
  %v48 = vmul.f32 %v28, %v32
  %v49 = vmul.f32 %v29, %v32
  %v50 = vld [vmem:[%s2] sm:$0x1]
  %v52 = vperm.slane %v50, 0
  %v54 = vadd.f32 %v34, %v52
  %v55 = vadd.f32 %v35, %v52
  %v56 = vadd.f32 %v36, %v52
  %v57 = vadd.f32 %v37, %v52
  %v58 = vadd.f32 %v38, %v52
  %v59 = vadd.f32 %v39, %v52
  %v60 = vadd.f32 %v40, %v52
  %v61 = vadd.f32 %v41, %v52
  %v62 = vadd.f32 %v42, %v52
  %v63 = vadd.f32 %v43, %v52
  %v64 = vadd.f32 %v44, %v52
  %v65 = vadd.f32 %v45, %v52
  %v66 = vadd.f32 %v46, %v52
  %v67 = vadd.f32 %v47, %v52
  %v68 = vadd.f32 %v48, %v52
  %v69 = vadd.f32 %v49, %v52
  %vm70 = vcmp.ge.f32.partialorder %v54, 0.0
  %vm71 = vcmp.ge.f32.partialorder %v55, 0.0
  %vm72 = vcmp.ge.f32.partialorder %v56, 0.0
  %vm73 = vcmp.ge.f32.partialorder %v57, 0.0
  %vm74 = vcmp.ge.f32.partialorder %v58, 0.0
  %vm75 = vcmp.ge.f32.partialorder %v59, 0.0
  %vm76 = vcmp.ge.f32.partialorder %v60, 0.0
  %vm77 = vcmp.ge.f32.partialorder %v61, 0.0
  %vm78 = vcmp.ge.f32.partialorder %v62, 0.0
  %vm79 = vcmp.ge.f32.partialorder %v63, 0.0
  %vm80 = vcmp.ge.f32.partialorder %v64, 0.0
  %vm81 = vcmp.ge.f32.partialorder %v65, 0.0
  %vm82 = vcmp.ge.f32.partialorder %v66, 0.0
  %vm83 = vcmp.ge.f32.partialorder %v67, 0.0
  %vm84 = vcmp.ge.f32.partialorder %v68, 0.0
  %vm85 = vcmp.ge.f32.partialorder %v69, 0.0
  %v86 = vmul.f32 %v54, 0.2
  %v87 = vmul.f32 %v55, 0.2
  %v88 = vmul.f32 %v56, 0.2
  %v89 = vmul.f32 %v57, 0.2
  %v90 = vmul.f32 %v58, 0.2
  %v91 = vmul.f32 %v59, 0.2
  %v92 = vmul.f32 %v60, 0.2
  %v93 = vmul.f32 %v61, 0.2
  %v94 = vmul.f32 %v62, 0.2
  %v95 = vmul.f32 %v63, 0.2
  %v96 = vmul.f32 %v64, 0.2
  %v97 = vmul.f32 %v65, 0.2
  %v98 = vmul.f32 %v66, 0.2
  %v99 = vmul.f32 %v67, 0.2
  %v100 = vmul.f32 %v68, 0.2
  %v101 = vmul.f32 %v69, 0.2
  %v102 = vsel %vm70, %v54, %v86
  %v103 = vsel %vm71, %v55, %v87
  %v104 = vsel %vm72, %v56, %v88
  %v105 = vsel %vm73, %v57, %v89
  %v106 = vsel %vm74, %v58, %v90
  %v107 = vsel %vm75, %v59, %v91
  %v108 = vsel %vm76, %v60, %v92
  %v109 = vsel %vm77, %v61, %v93
  %v110 = vsel %vm78, %v62, %v94
  %v111 = vsel %vm79, %v63, %v95
  %v112 = vsel %vm80, %v64, %v96
  %v113 = vsel %vm81, %v65, %v97
  %v114 = vsel %vm82, %v66, %v98
  %v115 = vsel %vm83, %v67, %v99
  %v116 = vsel %vm84, %v68, %v100
  %v117 = vsel %vm85, %v69, %v101
  %118 = vst [vmem:[%s3] sm:$0xff] %v102
  %119 = vst [vmem:[%s3 + $0x8] sm:$0xff] %v103
  %120 = vst [vmem:[%s3 + $0x10] sm:$0xff] %v104
  %121 = vst [vmem:[%s3 + $0x18] sm:$0xff] %v105
  %122 = vst [vmem:[%s3 + $0x20] sm:$0xff] %v106
  %123 = vst [vmem:[%s3 + $0x28] sm:$0xff] %v107
  %124 = vst [vmem:[%s3 + $0x30] sm:$0xff] %v108
  %125 = vst [vmem:[%s3 + $0x38] sm:$0xff] %v109
  %126 = vst [vmem:[%s3 + $0x40] sm:$0xff] %v110
  %127 = vst [vmem:[%s3 + $0x48] sm:$0xff] %v111
  %128 = vst [vmem:[%s3 + $0x50] sm:$0xff] %v112
  %129 = vst [vmem:[%s3 + $0x58] sm:$0xff] %v113
  %130 = vst [vmem:[%s3 + $0x60] sm:$0xff] %v114
  %131 = vst [vmem:[%s3 + $0x68] sm:$0xff] %v115
  %132 = vst [vmem:[%s3 + $0x70] sm:$0xff] %v116
  %133 = vst [vmem:[%s3 + $0x78] sm:$0xff] %v117
  // Predicated region
  $region14: #{encoder_forward.8} parent=0 // pred_check
    _
  $region15: #{encoder_forward.8} parent=0 // pred_check_branch
    %135 = sbr.rel (0) target = $region17
  $region16: #{encoder_forward.8} parent=0 // pred_region
    _
  $region17: #{encoder_forward.8} parent=0 // pred_fallthru
    _
  // Predicated region
  $region18: #{encoder_forward.8} parent=0 // pred_check
    _
  $region19: #{encoder_forward.8} parent=0 // pred_check_branch
    %137 = sbr.rel (0) target = $region21
  $region20: #{encoder_forward.8} parent=0 // pred_region
    _
  $region21: #{encoder_forward.8} parent=0 // pred_fallthru
    _

// kernel: encoder_forward.9
$region0: #{encoder_forward.9}
  #allocation0 [shape = 'u32[]', space=smem, size = 0x4, offset = 0x4, fixed_abs, tag = 'smem constant byte address 0x4 - core index']
  #allocation1 [shape = 'u32[72,128]{1,0:T(1,128)}', space=vmem, size = 0x9000, scoped, tag = 'internal scratch']
  #allocation2 [shape = 'f32[32,128]{1,0:T(8,128)}', space=vmem, size = 0x4000, scoped, tag = 'scratch operand']
  %s0 = inlined_call_operand.vmem [shape: bf16[32,128], index: 0, kind: input, shape index: {}]
  %s1 = inlined_call_operand.vmem [shape: bf16[128,128], index: 1, kind: input, shape index: {}]
  %s2 = inlined_call_operand.vmem [shape: f32[32,128], index: 2, kind: output, shape index: {0}]
  %s3 = inlined_call_operand.vmem [shape: f32[1,2,128], index: 3, kind: output, shape index: {1}]
  %4 = xla_tuple %s2, %s3
  %s5 = sld [smem:[#allocation0]]
  $region34: #{encoder_forward.9} parent=0
    _
  %s7 = ssub.s32 1, %s5
  %s8 = scalar_select 0, %s7, %s5
  // Predicated region
  $region2: #{encoder_forward.9} parent=0 // pred_check
    _
  $region3: #{encoder_forward.9} parent=0 // pred_check_branch
    %10 = sbr.rel (0) target = $region5
  $region4: #{encoder_forward.9} parent=0 // pred_region
    _
  $region5: #{encoder_forward.9} parent=0 // pred_fallthru
    _
  // Predicated region
  $region6: #{encoder_forward.9} parent=0 // pred_check
    _
  $region7: #{encoder_forward.9} parent=0 // pred_check_branch
    %12 = sbr.rel (0) target = $region9
  $region8: #{encoder_forward.9} parent=0 // pred_region
    _
  $region9: #{encoder_forward.9} parent=0 // pred_fallthru
    _
  %p13 = scmp.eq.s32.totalorder 0, 0
  // Predicated region
  $region10: #{encoder_forward.9} parent=0 // pred_check
    %p14 = pneg %p13
  $region11: #{encoder_forward.9} parent=0 // pred_check_branch
    %16 = sbr.rel (%p14) target = $region13
  $region12: #{encoder_forward.9} parent=0 // pred_region
    %17 = vst [vmem:[#allocation2] sm:$0xff] 0.0
    %18 = vst [vmem:[#allocation2 + $0x8] sm:$0xff] 0.0
    %19 = vst [vmem:[#allocation2 + $0x10] sm:$0xff] 0.0
    %20 = vst [vmem:[#allocation2 + $0x18] sm:$0xff] 0.0
  $region13: #{encoder_forward.9} parent=0 // pred_fallthru
    _
  %v21 = vld [vmem:[#allocation2] sm:$0xff]
  %v22 = vld [vmem:[#allocation2 + $0x8] sm:$0xff]
  %v23 = vld [vmem:[#allocation2 + $0x10] sm:$0xff]
  %v24 = vld [vmem:[#allocation2 + $0x18] sm:$0xff]
  %v25 = vld [vmem:[%s0] sm:$0xf]
  %v26 = vld [vmem:[%s0 + $0x4] sm:$0xf]
  %v27 = vld [vmem:[%s0 + $0x8] sm:$0xf]
  %v28 = vld [vmem:[%s0 + $0xc] sm:$0xf]
  %v29 = vld [vmem:[%s1] sm:$0xf]
  %v30 = vld [vmem:[%s1 + $0x4] sm:$0xf]
  %v31 = vld [vmem:[%s1 + $0x8] sm:$0xf]
  %v32 = vld [vmem:[%s1 + $0xc] sm:$0xf]
  %v33 = vld [vmem:[%s1 + $0x10] sm:$0xf]
  %v34 = vld [vmem:[%s1 + $0x14] sm:$0xf]
  %v35 = vld [vmem:[%s1 + $0x18] sm:$0xf]
  %v36 = vld [vmem:[%s1 + $0x1c] sm:$0xf]
  %v37 = vld [vmem:[%s1 + $0x20] sm:$0xf]
  %v38 = vld [vmem:[%s1 + $0x24] sm:$0xf]
  %v39 = vld [vmem:[%s1 + $0x28] sm:$0xf]
  %v40 = vld [vmem:[%s1 + $0x2c] sm:$0xf]
  %v41 = vld [vmem:[%s1 + $0x30] sm:$0xf]
  %v42 = vld [vmem:[%s1 + $0x34] sm:$0xf]
  %v43 = vld [vmem:[%s1 + $0x38] sm:$0xf]
  %v44 = vld [vmem:[%s1 + $0x3c] sm:$0xf]
  %v49 = vunpack.c.l.b16 %v25
  %v50 = vunpack.c.l.b16 %v26
  %v51 = vunpack.c.l.b16 %v27
  %v52 = vunpack.c.l.b16 %v28
  %v53 = vpack.c.b16 %v50, %v49
  %v54 = vpack.c.b16 %v52, %v51
  %v73 = vunpack.c.l.b16 %v29
  %v74 = vunpack.c.l.b16 %v30
  %v75 = vunpack.c.l.b16 %v31
  %v76 = vunpack.c.l.b16 %v32
  %v77 = vunpack.c.l.b16 %v33
  %v78 = vunpack.c.l.b16 %v34
  %v79 = vunpack.c.l.b16 %v35
  %v80 = vunpack.c.l.b16 %v36
  %v81 = vunpack.c.l.b16 %v37
  %v82 = vunpack.c.l.b16 %v38
  %v83 = vunpack.c.l.b16 %v39
  %v84 = vunpack.c.l.b16 %v40
  %v85 = vunpack.c.l.b16 %v41
  %v86 = vunpack.c.l.b16 %v42
  %v87 = vunpack.c.l.b16 %v43
  %v88 = vunpack.c.l.b16 %v44
  %v89 = vpack.c.b16 %v74, %v73
  %v90 = vpack.c.b16 %v76, %v75
  %v91 = vpack.c.b16 %v78, %v77
  %v92 = vpack.c.b16 %v80, %v79
  %v93 = vpack.c.b16 %v82, %v81
  %v94 = vpack.c.b16 %v84, %v83
  %v95 = vpack.c.b16 %v86, %v85
  %v96 = vpack.c.b16 %v88, %v87
  %105 = vmatpush.bf16.msra.mxu0 %v96
  %106 = vmatpush.bf16.msra.mxu0 %v95
  %107 = vmatpush.bf16.msra.mxu0 %v94
  %108 = vmatpush.bf16.msra.mxu0 %v93
  %109 = vmatpush.bf16.msra.mxu0 %v92
  %110 = vmatpush.bf16.msra.mxu0 %v91
  %111 = vmatpush.bf16.msra.mxu0 %v90
  %112 = vmatpush.bf16.msra.mxu0 %v89
  %113 = vmatmul.bf16.gmra.mxu0 %v53
  %v114 = vpop.f32.mrf.mxu0
  %v115 = vadd.f32 0.0, %v114
  %v116 = vpop.f32.mrf.mxu0
  %v117 = vadd.f32 0.0, %v116
  %118 = vmatmul.bf16.gmra.mxu0 %v54
  %v119 = vpop.f32.mrf.mxu0
  %v120 = vadd.f32 0.0, %v119
  %v121 = vpop.f32.mrf.mxu0
  %v122 = vadd.f32 0.0, %v121
  %123 = vdwg.mxu0
  %v124 = vadd.f32 %v21, %v115
  %v125 = vadd.f32 %v22, %v117
  %v126 = vadd.f32 %v23, %v120
  %v127 = vadd.f32 %v24, %v122
  %128 = vst [vmem:[#allocation2] sm:$0xff] %v124
  %129 = vst [vmem:[#allocation2 + $0x8] sm:$0xff] %v125
  %130 = vst [vmem:[#allocation2 + $0x10] sm:$0xff] %v126
  %131 = vst [vmem:[#allocation2 + $0x18] sm:$0xff] %v127
  // Predicated region
  $region14: #{encoder_forward.9} parent=0 // pred_check
    %p132 = pneg %p13
  $region15: #{encoder_forward.9} parent=0 // pred_check_branch
    %134 = sbr.rel (%p132) target = $region17
  $region16: #{encoder_forward.9} parent=0 // pred_region
    %v135 = vld [vmem:[#allocation2] sm:$0xff]
    %v136 = vld [vmem:[#allocation2 + $0x8] sm:$0xff]
    %v137 = vld [vmem:[#allocation2 + $0x10] sm:$0xff]
    %v138 = vld [vmem:[#allocation2 + $0x18] sm:$0xff]
    %139 = vst [vmem:[%s2] sm:$0xff] %v135
    %140 = vst [vmem:[%s2 + $0x8] sm:$0xff] %v136
    %141 = vst [vmem:[%s2 + $0x10] sm:$0xff] %v137
    %142 = vst [vmem:[%s2 + $0x18] sm:$0xff] %v138
    %v143 = vadd.f32 %v135, %v136
    %v144 = vadd.f32 %v143, %v137
    %v145 = vadd.f32 %v144, %v138
    %v146 = vrot.slane %v145, 4
    %v147 = vadd.f32 %v145, %v146
    %v148 = vrot.slane %v147, 2
    %v149 = vadd.f32 %v147, %v148
    %v150 = vrot.slane %v149, 1
    %v151 = vadd.f32 %v149, %v150
    %v152 = vmul.f32 %v135, %v135
    %v153 = vmul.f32 %v136, %v136
    %v154 = vmul.f32 %v137, %v137
    %v155 = vmul.f32 %v138, %v138
    %v156 = vadd.f32 %v152, %v153
    %v157 = vadd.f32 %v156, %v154
    %v158 = vadd.f32 %v157, %v155
    %v159 = vrot.slane %v158, 4
    %v160 = vadd.f32 %v158, %v159
    %v161 = vrot.slane %v160, 2
    %v162 = vadd.f32 %v160, %v161
    %v163 = vrot.slane %v162, 1
    %v164 = vadd.f32 %v162, %v163
    %vm165 = vcmask 1040384
    %v166 = vsel %vm165, %v151, %v164
    %167 = vst [vmem:[%s3] sm:$0x3] %v166
  $region17: #{encoder_forward.9} parent=0 // pred_fallthru
    _
  // Predicated region
  $region18: #{encoder_forward.9} parent=0 // pred_check
    _
  $region19: #{encoder_forward.9} parent=0 // pred_check_branch
    %169 = sbr.rel (0) target = $region21
  $region20: #{encoder_forward.9} parent=0 // pred_region
    _
  $region21: #{encoder_forward.9} parent=0 // pred_fallthru
    _
  // Predicated region
  $region22: #{encoder_forward.9} parent=0 // pred_check
    _
  $region23: #{encoder_forward.9} parent=0 // pred_check_branch
    %171 = sbr.rel (0) target = $region25
  $region24: #{encoder_forward.9} parent=0 // pred_region
    _
  $region25: #{encoder_forward.9} parent=0 // pred_fallthru
    _
  // Predicated region
  $region26: #{encoder_forward.9} parent=0 // pred_check
    _
  $region27: #{encoder_forward.9} parent=0 // pred_check_branch
    %173 = sbr.rel (0) target = $region29
  $region28: #{encoder_forward.9} parent=0 // pred_region
    _
  $region29: #{encoder_forward.9} parent=0 // pred_fallthru
    _
  // Predicated region
  $region30: #{encoder_forward.9} parent=0 // pred_check
    _
  $region31: #{encoder_forward.9} parent=0 // pred_check_branch
    %175 = sbr.rel (0) target = $region33
  $region32: #{encoder_forward.9} parent=0 // pred_region
    _
  $region33: #{encoder_forward.9} parent=0 // pred_fallthru
    _

// kernel: encoder_forward.10
$region0: #{encoder_forward.10}
  #allocation0 [shape = 'u32[]', space=smem, size = 0x4, offset = 0x4, fixed_abs, tag = 'smem constant byte address 0x4 - core index']
  #allocation1 [shape = 'u32[72,128]{1,0:T(1,128)}', space=vmem, size = 0x9000, scoped, tag = 'internal scratch']
  %s0 = inlined_call_operand.vmem [shape: f32[32,128], index: 0, kind: input, shape index: {}]
  %s1 = inlined_call_operand.vmem [shape: f32[1,128], index: 1, kind: input, shape index: {}]
  %s2 = inlined_call_operand.vmem [shape: f32[1,128], index: 2, kind: input, shape index: {}]
  %s3 = inlined_call_operand.vmem [shape: f32[32,128], index: 3, kind: output, shape index: {}]
  %s4 = sld [smem:[#allocation0]]
  $region22: #{encoder_forward.10} parent=0
    _
  %s6 = ssub.s32 1, %s4
  %s7 = scalar_select 0, %s6, %s4
  // Predicated region
  $region2: #{encoder_forward.10} parent=0 // pred_check
    _
  $region3: #{encoder_forward.10} parent=0 // pred_check_branch
    %9 = sbr.rel (0) target = $region5
  $region4: #{encoder_forward.10} parent=0 // pred_region
    _
  $region5: #{encoder_forward.10} parent=0 // pred_fallthru
    _
  // Predicated region
  $region6: #{encoder_forward.10} parent=0 // pred_check
    _
  $region7: #{encoder_forward.10} parent=0 // pred_check_branch
    %11 = sbr.rel (0) target = $region9
  $region8: #{encoder_forward.10} parent=0 // pred_region
    _
  $region9: #{encoder_forward.10} parent=0 // pred_fallthru
    _
  // Predicated region
  $region10: #{encoder_forward.10} parent=0 // pred_check
    _
  $region11: #{encoder_forward.10} parent=0 // pred_check_branch
    %13 = sbr.rel (0) target = $region13
  $region12: #{encoder_forward.10} parent=0 // pred_region
    _
  $region13: #{encoder_forward.10} parent=0 // pred_fallthru
    _
  %v14 = vld [vmem:[%s0] sm:$0xff]
  %v15 = vld [vmem:[%s0 + $0x8] sm:$0xff]
  %v16 = vld [vmem:[%s0 + $0x10] sm:$0xff]
  %v17 = vld [vmem:[%s0 + $0x18] sm:$0xff]
  %v18 = vld [vmem:[%s1] sm:$0x1]
  %v20 = vperm.slane %v18, 0
  %v22 = vmul.f32 %v14, %v20
  %v23 = vmul.f32 %v15, %v20
  %v24 = vmul.f32 %v16, %v20
  %v25 = vmul.f32 %v17, %v20
  %v26 = vld [vmem:[%s2] sm:$0x1]
  %v28 = vperm.slane %v26, 0
  %v30 = vadd.f32 %v22, %v28
  %v31 = vadd.f32 %v23, %v28
  %v32 = vadd.f32 %v24, %v28
  %v33 = vadd.f32 %v25, %v28
  %vm34 = vcmp.ge.f32.partialorder %v30, 0.0
  %vm35 = vcmp.ge.f32.partialorder %v31, 0.0
  %vm36 = vcmp.ge.f32.partialorder %v32, 0.0
  %vm37 = vcmp.ge.f32.partialorder %v33, 0.0
  %v38 = vmul.f32 %v30, 0.2
  %v39 = vmul.f32 %v31, 0.2
  %v40 = vmul.f32 %v32, 0.2
  %v41 = vmul.f32 %v33, 0.2
  %v42 = vsel %vm34, %v30, %v38
  %v43 = vsel %vm35, %v31, %v39
  %v44 = vsel %vm36, %v32, %v40
  %v45 = vsel %vm37, %v33, %v41
  %46 = vst [vmem:[%s3] sm:$0xff] %v42
  %47 = vst [vmem:[%s3 + $0x8] sm:$0xff] %v43
  %48 = vst [vmem:[%s3 + $0x10] sm:$0xff] %v44
  %49 = vst [vmem:[%s3 + $0x18] sm:$0xff] %v45
  // Predicated region
  $region14: #{encoder_forward.10} parent=0 // pred_check
    _
  $region15: #{encoder_forward.10} parent=0 // pred_check_branch
    %51 = sbr.rel (0) target = $region17
  $region16: #{encoder_forward.10} parent=0 // pred_region
    _
  $region17: #{encoder_forward.10} parent=0 // pred_fallthru
    _
  // Predicated region
  $region18: #{encoder_forward.10} parent=0 // pred_check
    _
  $region19: #{encoder_forward.10} parent=0 // pred_check_branch
    %53 = sbr.rel (0) target = $region21
  $region20: #{encoder_forward.10} parent=0 // pred_region
    _
  $region21: #{encoder_forward.10} parent=0 // pred_fallthru
    _

// kernel: encoder_forward.11
$region0: #{encoder_forward.11}
  #allocation0 [shape = 'u32[]', space=smem, size = 0x4, offset = 0x4, fixed_abs, tag = 'smem constant byte address 0x4 - core index']
  #allocation1 [shape = 'u32[72,128]{1,0:T(1,128)}', space=vmem, size = 0x9000, scoped, tag = 'internal scratch']
  #allocation2 [shape = 'f32[8,128]{1,0:T(8,128)}', space=vmem, size = 0x1000, scoped, tag = 'scratch operand']
  %s0 = inlined_call_operand.vmem [shape: bf16[8,256], index: 0, kind: input, shape index: {}]
  %s1 = inlined_call_operand.vmem [shape: bf16[256,128], index: 1, kind: input, shape index: {}]
  %s2 = inlined_call_operand.vmem [shape: f32[8,128], index: 2, kind: output, shape index: {}]
  %s3 = sld [smem:[#allocation0]]
  $region26: #{encoder_forward.11} parent=0
    _
  %s5 = ssub.s32 1, %s3
  %s6 = scalar_select 0, %s5, %s3
  // Predicated region
  $region2: #{encoder_forward.11} parent=0 // pred_check
    _
  $region3: #{encoder_forward.11} parent=0 // pred_check_branch
    %8 = sbr.rel (0) target = $region5
  $region4: #{encoder_forward.11} parent=0 // pred_region
    _
  $region5: #{encoder_forward.11} parent=0 // pred_fallthru
    _
  // Predicated region
  $region6: #{encoder_forward.11} parent=0 // pred_check
    _
  $region7: #{encoder_forward.11} parent=0 // pred_check_branch
    %10 = sbr.rel (0) target = $region9
  $region8: #{encoder_forward.11} parent=0 // pred_region
    _
  $region9: #{encoder_forward.11} parent=0 // pred_fallthru
    _
  %p11 = scmp.eq.s32.totalorder 0, 0
  // Predicated region
  $region10: #{encoder_forward.11} parent=0 // pred_check
    %p12 = pneg %p11
  $region11: #{encoder_forward.11} parent=0 // pred_check_branch
    %14 = sbr.rel (%p12) target = $region13
  $region12: #{encoder_forward.11} parent=0 // pred_region
    %15 = vst [vmem:[#allocation2] sm:$0xff] 0.0
  $region13: #{encoder_forward.11} parent=0 // pred_fallthru
    _
  %v16 = vld [vmem:[#allocation2] sm:$0xff]
  %v17 = vld [vmem:[%s0] sm:$0xff]
  %v18 = vld [vmem:[%s1] sm:$0xf]
  %v19 = vld [vmem:[%s1 + $0x4] sm:$0xf]
  %v20 = vld [vmem:[%s1 + $0x8] sm:$0xf]
  %v21 = vld [vmem:[%s1 + $0xc] sm:$0xf]
  %v22 = vld [vmem:[%s1 + $0x10] sm:$0xf]
  %v23 = vld [vmem:[%s1 + $0x14] sm:$0xf]
  %v24 = vld [vmem:[%s1 + $0x18] sm:$0xf]
  %v25 = vld [vmem:[%s1 + $0x1c] sm:$0xf]
  %v26 = vld [vmem:[%s1 + $0x20] sm:$0xf]
  %v27 = vld [vmem:[%s1 + $0x24] sm:$0xf]
  %v28 = vld [vmem:[%s1 + $0x28] sm:$0xf]
  %v29 = vld [vmem:[%s1 + $0x2c] sm:$0xf]
  %v30 = vld [vmem:[%s1 + $0x30] sm:$0xf]
  %v31 = vld [vmem:[%s1 + $0x34] sm:$0xf]
  %v32 = vld [vmem:[%s1 + $0x38] sm:$0xf]
  %v33 = vld [vmem:[%s1 + $0x3c] sm:$0xf]
  %v34 = vld [vmem:[%s1 + $0x40] sm:$0xf]
  %v35 = vld [vmem:[%s1 + $0x44] sm:$0xf]
  %v36 = vld [vmem:[%s1 + $0x48] sm:$0xf]
  %v37 = vld [vmem:[%s1 + $0x4c] sm:$0xf]
  %v38 = vld [vmem:[%s1 + $0x50] sm:$0xf]
  %v39 = vld [vmem:[%s1 + $0x54] sm:$0xf]
  %v40 = vld [vmem:[%s1 + $0x58] sm:$0xf]
  %v41 = vld [vmem:[%s1 + $0x5c] sm:$0xf]
  %v42 = vld [vmem:[%s1 + $0x60] sm:$0xf]
  %v43 = vld [vmem:[%s1 + $0x64] sm:$0xf]
  %v44 = vld [vmem:[%s1 + $0x68] sm:$0xf]
  %v45 = vld [vmem:[%s1 + $0x6c] sm:$0xf]
  %v46 = vld [vmem:[%s1 + $0x70] sm:$0xf]
  %v47 = vld [vmem:[%s1 + $0x74] sm:$0xf]
  %v48 = vld [vmem:[%s1 + $0x78] sm:$0xf]
  %v49 = vld [vmem:[%s1 + $0x7c] sm:$0xf]
  %v51 = vunpack.c.l.b16 %v17
  %v52 = vunpack.c.h.b16 %v17
  %v53 = vpack.c.b16 %v51, %v51
  %v54 = vpack.c.b16 %v52, %v52
  %v89 = vunpack.c.l.b16 %v18
  %v90 = vunpack.c.l.b16 %v19
  %v91 = vunpack.c.l.b16 %v20
  %v92 = vunpack.c.l.b16 %v21
  %v93 = vunpack.c.l.b16 %v22
  %v94 = vunpack.c.l.b16 %v23
  %v95 = vunpack.c.l.b16 %v24
  %v96 = vunpack.c.l.b16 %v25
  %v97 = vunpack.c.l.b16 %v26
  %v98 = vunpack.c.l.b16 %v27
  %v99 = vunpack.c.l.b16 %v28
  %v100 = vunpack.c.l.b16 %v29
  %v101 = vunpack.c.l.b16 %v30
  %v102 = vunpack.c.l.b16 %v31
  %v103 = vunpack.c.l.b16 %v32
  %v104 = vunpack.c.l.b16 %v33
  %v105 = vunpack.c.l.b16 %v34
  %v106 = vunpack.c.l.b16 %v35
  %v107 = vunpack.c.l.b16 %v36
  %v108 = vunpack.c.l.b16 %v37
  %v109 = vunpack.c.l.b16 %v38
  %v110 = vunpack.c.l.b16 %v39
  %v111 = vunpack.c.l.b16 %v40
  %v112 = vunpack.c.l.b16 %v41
  %v113 = vunpack.c.l.b16 %v42
  %v114 = vunpack.c.l.b16 %v43
  %v115 = vunpack.c.l.b16 %v44
  %v116 = vunpack.c.l.b16 %v45
  %v117 = vunpack.c.l.b16 %v46
  %v118 = vunpack.c.l.b16 %v47
  %v119 = vunpack.c.l.b16 %v48
  %v120 = vunpack.c.l.b16 %v49
  %v121 = vpack.c.b16 %v90, %v89
  %v122 = vpack.c.b16 %v92, %v91
  %v123 = vpack.c.b16 %v94, %v93
  %v124 = vpack.c.b16 %v96, %v95
  %v125 = vpack.c.b16 %v98, %v97
  %v126 = vpack.c.b16 %v100, %v99
  %v127 = vpack.c.b16 %v102, %v101
  %v128 = vpack.c.b16 %v104, %v103
  %v129 = vpack.c.b16 %v106, %v105
  %v130 = vpack.c.b16 %v108, %v107
  %v131 = vpack.c.b16 %v110, %v109
  %v132 = vpack.c.b16 %v112, %v111
  %v133 = vpack.c.b16 %v114, %v113
  %v134 = vpack.c.b16 %v116, %v115
  %v135 = vpack.c.b16 %v118, %v117
  %v136 = vpack.c.b16 %v120, %v119
  %153 = vmatpush.bf16.msra.mxu0 %v128
  %154 = vmatpush.bf16.msra.mxu0 %v127
  %155 = vmatpush.bf16.msra.mxu0 %v126
  %156 = vmatpush.bf16.msra.mxu0 %v125
  %157 = vmatpush.bf16.msra.mxu0 %v124
  %158 = vmatpush.bf16.msra.mxu0 %v123
  %159 = vmatpush.bf16.msra.mxu0 %v122
  %160 = vmatpush.bf16.msra.mxu0 %v121
  %161 = vmatmul.bf16.gmra.mxu0 %v53
  %v162 = vpop.f32.mrf.mxu0
  %v163 = vadd.f32 0.0, %v162
  %v164 = vpop.f32.mrf.mxu0
  %165 = vdwg.mxu0
  %166 = vmatpush.bf16.msra.mxu0 %v136
  %167 = vmatpush.bf16.msra.mxu0 %v135
  %168 = vmatpush.bf16.msra.mxu0 %v134
  %169 = vmatpush.bf16.msra.mxu0 %v133
  %170 = vmatpush.bf16.msra.mxu0 %v132
  %171 = vmatpush.bf16.msra.mxu0 %v131
  %172 = vmatpush.bf16.msra.mxu0 %v130
  %173 = vmatpush.bf16.msra.mxu0 %v129
  %174 = vmatmul.bf16.gmra.mxu0 %v54
  %v175 = vpop.f32.mrf.mxu0
  %v176 = vadd.f32 %v163, %v175
  %v177 = vpop.f32.mrf.mxu0
  %178 = vdwg.mxu0
  %v179 = vadd.f32 %v16, %v176
  %180 = vst [vmem:[#allocation2] sm:$0xff] %v179
  // Predicated region
  $region14: #{encoder_forward.11} parent=0 // pred_check
    %p181 = pneg %p11
  $region15: #{encoder_forward.11} parent=0 // pred_check_branch
    %183 = sbr.rel (%p181) target = $region17
  $region16: #{encoder_forward.11} parent=0 // pred_region
    %v184 = vld [vmem:[#allocation2] sm:$0xff]
    %185 = vst [vmem:[%s2] sm:$0xff] %v184
  $region17: #{encoder_forward.11} parent=0 // pred_fallthru
    _
  // Predicated region
  $region18: #{encoder_forward.11} parent=0 // pred_check
    _
  $region19: #{encoder_forward.11} parent=0 // pred_check_branch
    %187 = sbr.rel (0) target = $region21
  $region20: #{encoder_forward.11} parent=0 // pred_region
    _
  $region21: #{encoder_forward.11} parent=0 // pred_fallthru
    _
  // Predicated region
  $region22: #{encoder_forward.11} parent=0 // pred_check
    _
  $region23: #{encoder_forward.11} parent=0 // pred_check_branch
    %189 = sbr.rel (0) target = $region25
  $region24: #{encoder_forward.11} parent=0 // pred_region
    _
  $region25: #{encoder_forward.11} parent=0 // pred_fallthru
    _

</llo_original>
